<compile_context>
chip_gen: v7x
topology: tpu7x:2x2x1
jax: 0.10.0
libtpu: 0.0.40
codegen_flags: <defaults>
</compile_context>

<pallas_src>
from functools import partial

import jax
import jax.numpy as jnp
from jax import lax
from jax.experimental import pallas as pl
from jax.experimental.pallas import tpu as pltpu


def _pick_tile(n, pref, mult):
    """Largest divisor of n that is <= pref and a multiple of `mult`; else n."""
    if n <= pref:
        return n
    for t in range(pref, mult - 1, -1):
        if n % t == 0 and t % mult == 0:
            return t
    return n


# ----------------------------------------------------------------------------
# Kernel 1: Linear (z @ W + b), tiled over output features
# ----------------------------------------------------------------------------
def _linear_kernel(z_ref, w_ref, b_ref, o_ref):
    y = jnp.dot(z_ref[...], w_ref[...],
                preferred_element_type=jnp.float32) + b_ref[...]
    o_ref[...] = y.astype(o_ref.dtype)


def linear(z, w, b):
    B, L = z.shape
    F = w.shape[1]
    tf = _pick_tile(F, 512, 128)
    return pl.pallas_call(
        _linear_kernel,
        out_shape=jax.ShapeDtypeStruct((B, F), jnp.bfloat16),
        grid=(F // tf,),
        in_specs=[pl.BlockSpec((B, L), lambda i: (0, 0)),
                  pl.BlockSpec((L, tf), lambda i: (0, i)),
                  pl.BlockSpec((1, tf), lambda i: (0, i))],
        out_specs=pl.BlockSpec((B, tf), lambda i: (0, i)),
        compiler_params=pltpu.CompilerParams(
            dimension_semantics=("parallel",)),
    )(z.astype(jnp.bfloat16), w, b.reshape(1, -1))


# ----------------------------------------------------------------------------
# Kernel 2a: ConvTranspose2d as one tiled matmul + streaming BN statistics
# ----------------------------------------------------------------------------
def _convt_pass1_kernel(xcol_ref, w_ref, y_ref, mean_ref, m2_ref, *, tm):
    i = pl.program_id(0)

    @pl.when(i == 0)
    def _():
        mean_ref[...] = jnp.zeros_like(mean_ref)
        m2_ref[...] = jnp.zeros_like(m2_ref)

    # Plain matmul: (tm, 9*IC) @ (9*IC, 4*OC), f32 accumulation, bf16 store.
    y = jnp.dot(xcol_ref[...], w_ref[...], preferred_element_type=jnp.float32)
    y_ref[...] = y.astype(y_ref.dtype)

    # Per-tile centered stats, merged across tiles (Chan/Welford) into the
    # resident (constant index_map) output blocks -> no E[y^2]-E[y]^2 cancel.
    tile_mean = jnp.mean(y, axis=0, keepdims=True)            # (1, 4*OC)
    d = y - tile_mean
    tile_m2 = jnp.sum(d * d, axis=0, keepdims=True)           # (1, 4*OC)
    n_a = (i * tm).astype(jnp.float32)                        # samples so far
    n_b = float(tm)
    n_ab = n_a + n_b
    delta = tile_mean - mean_ref[...]
    mean_ref[...] = mean_ref[...] + delta * (n_b / n_ab)
    m2_ref[...] = m2_ref[...] + tile_m2 + delta * delta * (n_a * n_b / n_ab)


# ----------------------------------------------------------------------------
# Kernel 2b: BatchNorm scale/shift + ReLU (tiled, parallel over M)
# ----------------------------------------------------------------------------
def _bn_relu_kernel(y_ref, scale_ref, shift_ref, o_ref):
    y = y_ref[...].astype(jnp.float32)
    o_ref[...] = jnp.maximum(y * scale_ref[...] + shift_ref[...],
                             0.0).astype(o_ref.dtype)


def convt_bn_relu(x_nhwc, w_big, gamma, beta, eps=1e-5):
    """Fused ConvTranspose2d(4,2,1) + BatchNorm2d(train stats) + ReLU.

    x_nhwc: (B, H, W, IC) bf16; w_big: (9*IC, 4*OC) bf16 (see reorg_convt_weight).
    Returns (B, 2H, 2W, OC) bf16.
    """
    B, H, W, IC = x_nhwc.shape
    OC = gamma.shape[0]
    M = B * H * W

    # im2col in XLA/HBM (bf16): 9 shifted slabs of the zero-padded input.
    xp = jnp.pad(x_nhwc, ((0, 0), (1, 1), (1, 1), (0, 0)))
    xcol = jnp.concatenate(
        [xp[:, a:a + H, b:b + W, :] for a in range(3) for b in range(3)],
        axis=-1).reshape(M, 9 * IC)

    tm = _pick_tile(M, 512, 8)
    y_raw, col_mean, col_m2 = pl.pallas_call(
        partial(_convt_pass1_kernel, tm=tm),
        out_shape=(jax.ShapeDtypeStruct((M, 4 * OC), jnp.bfloat16),
                   jax.ShapeDtypeStruct((1, 4 * OC), jnp.float32),
                   jax.ShapeDtypeStruct((1, 4 * OC), jnp.float32)),
        grid=(M // tm,),
        in_specs=[pl.BlockSpec((tm, 9 * IC), lambda i: (i, 0)),
                  pl.BlockSpec((9 * IC, 4 * OC), lambda i: (0, 0))],
        out_specs=(pl.BlockSpec((tm, 4 * OC), lambda i: (i, 0)),
                   pl.BlockSpec((1, 4 * OC), lambda i: (0, 0)),
                   pl.BlockSpec((1, 4 * OC), lambda i: (0, 0))),
        compiler_params=pltpu.CompilerParams(
            dimension_semantics=("arbitrary",)),
    )(xcol, w_big)

    # Fold the 4 sub-pixel phase columns per channel (Chan combine) and build
    # the affine BN params -- tiny (4, OC) math, done as XLA glue.
    cm = col_mean.reshape(4, OC)
    c2 = col_m2.reshape(4, OC)
    mean_c = cm.mean(axis=0)                                   # (OC,)
    m2_c = c2.sum(axis=0) + M * ((cm - mean_c) ** 2).sum(axis=0)
    var_c = m2_c / (4.0 * M)                                   # biased (train BN)
    inv = lax.rsqrt(var_c + eps)
    scale_c = gamma * inv
    # ConvTranspose2d bias intentionally omitted: canceled by the mean subtraction.
    shift_c = beta - mean_c * scale_c
    scale4 = jnp.tile(scale_c, 4).reshape(1, 4 * OC)
    shift4 = jnp.tile(shift_c, 4).reshape(1, 4 * OC)

    tm2 = _pick_tile(M, 1024, 8)
    y = pl.pallas_call(
        _bn_relu_kernel,
        out_shape=jax.ShapeDtypeStruct((M, 4 * OC), jnp.bfloat16),
        grid=(M // tm2,),
        in_specs=[pl.BlockSpec((tm2, 4 * OC), lambda i: (i, 0)),
                  pl.BlockSpec((1, 4 * OC), lambda i: (0, 0)),
                  pl.BlockSpec((1, 4 * OC), lambda i: (0, 0))],
        out_specs=pl.BlockSpec((tm2, 4 * OC), lambda i: (i, 0)),
        compiler_params=pltpu.CompilerParams(
            dimension_semantics=("parallel",)),
    )(y_raw, scale4, shift4)

    # De-interleave the 4 sub-pixel phases -> (B, 2H, 2W, OC)  (bf16 XLA glue).
    y = y.reshape(B, H, W, 2, 2, OC).transpose(0, 1, 3, 2, 4, 5)
    return y.reshape(B, 2 * H, 2 * W, OC)


# ----------------------------------------------------------------------------
# Kernel 3: Conv2d(1x1) (+ Tanh), lane-dense transposed output -> NCHW directly
# ----------------------------------------------------------------------------
def _conv1x1_kernel(x_ref, w_ref, b_ref, o_ref, *, apply_tanh):
    x = x_ref[0]                                               # (tm, C) bf16
    # (OCp, C) contracted with (tm, C) -> (OCp, tm): spatial dim stays on lanes.
    y = lax.dot_general(w_ref[...], x, (((1,), (1,)), ((), ())),
                        preferred_element_type=jnp.float32)
    y = y + b_ref[...]                                         # (OCp, 1) bias
    if apply_tanh:
        y = jnp.tanh(y)
    o_ref[0] = y.astype(o_ref.dtype)


def conv1x1(x_nhwc, w_oc_c, b_oc1, *, apply_tanh):
    """x_nhwc: (B, H, W, C) bf16; w_oc_c: (OCp, C); b_oc1: (OCp, 1).
    Returns NCHW (B, OCp, H, W) float32 (caller slices the padded channels)."""
    B, H, W, C = x_nhwc.shape
    OCp = w_oc_c.shape[0]
    HW = H * W
    tm = _pick_tile(HW, 512, 128)
    x = x_nhwc.reshape(B, HW, C)
    out = pl.pallas_call(
        partial(_conv1x1_kernel, apply_tanh=apply_tanh),
        out_shape=jax.ShapeDtypeStruct((B, OCp, HW), jnp.float32),
        grid=(B, HW // tm),
        in_specs=[pl.BlockSpec((1, tm, C), lambda b, i: (b, i, 0)),
                  pl.BlockSpec((OCp, C), lambda b, i: (0, 0)),
                  pl.BlockSpec((OCp, 1), lambda b, i: (0, 0))],
        out_specs=pl.BlockSpec((1, OCp, tm), lambda b, i: (b, 0, i)),
        compiler_params=pltpu.CompilerParams(
            dimension_semantics=("parallel", "parallel")),
    )(x, w_oc_c, b_oc1)
    return out.reshape(B, OCp, H, W)


# ----------------------------------------------------------------------------
# Parameter init + forward
# ----------------------------------------------------------------------------
def reorg_convt_weight(wt):
    """PyTorch ConvTranspose2d weight (IC, OC, 4, 4) -> block-sparse (9*IC, 4*OC).

    Column block p = dy*2 + dx is the output sub-pixel phase; row block
    s = (dy+ty)*3 + (dx+tx) matches the order of the 9 shifted slabs built in
    convt_bn_relu().  Unused (s, p) blocks stay zero (2.25x extra MACs, hidden
    under the memory roofline; gives one lane-dense matmul per stage).
    """
    IC, OC = wt.shape[0], wt.shape[1]
    w_big = jnp.zeros((9 * IC, 4 * OC), wt.dtype)
    for dy in range(2):
        for dx in range(2):
            p = dy * 2 + dx
            for ty in range(2):
                for tx in range(2):
                    s = (dy + ty) * 3 + (dx + tx)
                    w_big = w_big.at[s * IC:(s + 1) * IC,
                                     p * OC:(p + 1) * OC].set(
                        wt[:, :, 3 - dy - 2 * ty, 3 - dx - 2 * tx])
    return w_big


def init_decoder_params(key, img_size, latent_size, end_channels, upsamplings,
                        output_channels):
    params = {}
    h0 = img_size // 2 ** upsamplings
    c0 = end_channels * 2 ** upsamplings
    feat = c0 * h0 * h0

    key, k1, k2 = jax.random.split(key, 3)
    # Linear weight stored (latent, feat) with columns in (h, w, c) order, i.e.
    # PyTorch column c*h0*h0 + y*h0 + x lives at column y*h0*c0 + x*c0 + c, so
    # reshape(B, h0, h0, c0) after the matmul is NHWC directly (no transpose).
    params["lin_w"] = (jax.random.normal(k1, (latent_size, feat), jnp.float32)
                       / jnp.sqrt(float(latent_size))).astype(jnp.bfloat16)
    params["lin_b"] = 0.01 * jax.random.normal(k2, (feat,), jnp.float32)

    params["ups"] = []
    for i in reversed(range(upsamplings)):
        ic = end_channels * 2 ** (i + 1)
        oc = end_channels * 2 ** i
        key, kw = jax.random.split(key)
        wt = (jax.random.normal(kw, (ic, oc, 4, 4), jnp.float32)
              / jnp.sqrt(float(ic) * 16.0))   # ConvTranspose2d weight (IC,OC,4,4)
        params["ups"].append({
            "w_big": reorg_convt_weight(wt).astype(jnp.bfloat16),
            # ConvTranspose2d bias not stored: canceled by train-mode BN mean.
            "gamma": jnp.ones((oc,), jnp.float32),   # BatchNorm2d defaults
            "beta": jnp.zeros((oc,), jnp.float32),
        })

    key, kw, kb = jax.random.split(key, 3)
    ocp = -(-output_channels // 8) * 8                     # pad OC to 8 sublanes
    w1 = (jax.random.normal(kw, (output_channels, end_channels), jnp.float32)
          / jnp.sqrt(float(end_channels)))                 # Conv2d 1x1 (OC, IC)
    b1 = 0.01 * jax.random.normal(kb, (output_channels,), jnp.float32)
    params["conv_w"] = (jnp.zeros((ocp, end_channels), jnp.float32)
                        .at[:output_channels].set(w1).astype(jnp.bfloat16))
    params["conv_b"] = (jnp.zeros((ocp, 1), jnp.float32)
                        .at[:output_channels, 0].set(b1))
    return params


def decoder_forward(params, z, *, img_size, end_channels, upsamplings,
                    output_channels, latent_size=None):
    del latent_size  # implied by params shapes; accepted so a config dict splats
    B = z.shape[0]
    h0 = img_size // 2 ** upsamplings
    c0 = end_channels * 2 ** upsamplings

    # Linear + Unflatten: columns are pre-permuted so this reshape is NHWC.
    x = linear(z, params["lin_w"], params["lin_b"])        # (B, c0*h0*h0) bf16
    x = x.reshape(B, h0, h0, c0)                           # NHWC

    # Upsampling stages: ConvTranspose2d + BatchNorm2d(train) + ReLU (fused)
    for layer in params["ups"]:
        x = convt_bn_relu(x, layer["w_big"], layer["gamma"], layer["beta"])

    # Conv2d(end_channels, output_channels, 1) + Tanh iff output_channels == 3.
    y = conv1x1(x, params["conv_w"], params["conv_b"],
                apply_tanh=(output_channels == 3))         # (B, OCp, H, W) NCHW
    return y[:, :output_channels]                          # drop channel padding


if __name__ == "__main__":
    cfg = dict(img_size=16, latent_size=32, end_channels=4, upsamplings=2,
               output_channels=3)
    batch = 2

    key = jax.random.PRNGKey(0)
    kp, kz = jax.random.split(key)
    params = init_decoder_params(kp, **cfg)
    z = jax.random.normal(kz, (batch, cfg["latent_size"]), jnp.float32)

    fwd = jax.jit(partial(decoder_forward, **cfg))
    out = jax.block_until_ready(fwd(params, z))

    assert out.shape == (batch, cfg["output_channels"], cfg["img_size"],
                         cfg["img_size"]), out.shape
    assert out.dtype == jnp.float32
    assert bool(jnp.all(jnp.isfinite(out)))
    assert bool(jnp.all(jnp.abs(out) <= 1.0))  # tanh output range
    print("KERNEL_OK")
</pallas_src>

<mosaic_0001>
module attributes {stable_mosaic.version = 11 : i64} {
  func.func @_linear_kernel(%arg0: i32, %arg1: memref<2x32xbf16, #tpu.memory_space<vmem>>, %arg2: memref<32x256xbf16, #tpu.memory_space<vmem>>, %arg3: memref<1x256xf32, #tpu.memory_space<vmem>>, %arg4: memref<2x256xbf16, #tpu.memory_space<vmem>>) attributes {dimension_semantics = [#tpu.dimension_semantics<parallel>], iteration_bounds = array<i64: 1>, scalar_prefetch = 0 : i64, scratch_operands = 0 : i64, tpu.core_type = #tpu.core_type<tc>, window_params = [{pipeline_mode = #tpu.pipeline_mode<synchronous>, transform_indices = @transform_0, window_bounds = array<i64: 2, 32>}, {transform_indices = @transform_1, window_bounds = array<i64: 32, 256>}, {transform_indices = @transform_2, window_bounds = array<i64: 1, 256>}, {transform_indices = @transform_3, window_bounds = array<i64: 2, 256>}]} {
    %c0 = arith.constant 0 : index
    %c0_0 = arith.constant 0 : index
    %0 = vector.load %arg1[%c0, %c0_0] : memref<2x32xbf16, #tpu.memory_space<vmem>>, vector<2x32xbf16>
    %c0_1 = arith.constant 0 : index
    %c0_2 = arith.constant 0 : index
    %1 = vector.load %arg2[%c0_1, %c0_2] : memref<32x256xbf16, #tpu.memory_space<vmem>>, vector<32x256xbf16>
    %cst = arith.constant dense<0.000000e+00> : vector<2x256xf32>
    %2 = tpu.matmul %0, %1, %cst {dimension_numbers = #tpu.dot_dimension_numbers<[1], [0], [0], [1], [0, 0, 1, 1], [], []>} : vector<2x32xbf16>, vector<32x256xbf16>, vector<2x256xf32> -> vector<2x256xf32>
    %c0_3 = arith.constant 0 : index
    %c0_4 = arith.constant 0 : index
    %3 = vector.load %arg3[%c0_3, %c0_4] : memref<1x256xf32, #tpu.memory_space<vmem>>, vector<1x256xf32>
    %4 = vector.broadcast %3 : vector<1x256xf32> to vector<2x256xf32>
    %5 = arith.addf %2, %4 : vector<2x256xf32>
    %6 = arith.truncf %5 : vector<2x256xf32> to vector<2x256xbf16>
    %c0_5 = arith.constant 0 : index
    %c0_6 = arith.constant 0 : index
    %7 = vector.load %arg4[%c0_5, %c0_6] : memref<2x256xbf16, #tpu.memory_space<vmem>>, vector<2x256xbf16>
    tpu.vector_store %arg4[%c0_5, %c0_6], %6 {strides = array<i32>} : memref<2x256xbf16, #tpu.memory_space<vmem>>, vector<2x256xbf16>,
    return
  }
  func.func @transform_0(%arg0: i32) -> (i32, i32) {
    %c0_i32 = arith.constant 0 : i32
    %c0_i32_0 = arith.constant 0 : i32
    %c0_i32_1 = arith.constant 0 : i32
    return %c0_i32, %c0_i32_0 : i32, i32
  }
  func.func @transform_1(%arg0: i32) -> (i32, i32) {
    %c0_i32 = arith.constant 0 : i32
    %c0_i32_0 = arith.constant 0 : i32
    return %c0_i32, %arg0 : i32, i32
  }
  func.func @transform_2(%arg0: i32) -> (i32, i32) {
    %c0_i32 = arith.constant 0 : i32
    %c0_i32_0 = arith.constant 0 : i32
    return %c0_i32, %arg0 : i32, i32
  }
  func.func @transform_3(%arg0: i32) -> (i32, i32) {
    %c0_i32 = arith.constant 0 : i32
    %c0_i32_0 = arith.constant 0 : i32
    return %c0_i32, %arg0 : i32, i32
  }
}

module attributes {stable_mosaic.version = 11 : i64} {
  func.func @_convt_pass1_kernel(%arg0: i32, %arg1: memref<32x144xbf16, #tpu.memory_space<vmem>>, %arg2: memref<144x32xbf16, #tpu.memory_space<vmem>>, %arg3: memref<32x32xbf16, #tpu.memory_space<vmem>>, %arg4: memref<1x32xf32, #tpu.memory_space<vmem>>, %arg5: memref<1x32xf32, #tpu.memory_space<vmem>>) attributes {dimension_semantics = [#tpu.dimension_semantics<arbitrary>], iteration_bounds = array<i64: 1>, scalar_prefetch = 0 : i64, scratch_operands = 0 : i64, tpu.core_type = #tpu.core_type<tc>, window_params = [{transform_indices = @transform_0, window_bounds = array<i64: 32, 144>}, {pipeline_mode = #tpu.pipeline_mode<synchronous>, transform_indices = @transform_1, window_bounds = array<i64: 144, 32>}, {transform_indices = @transform_2, window_bounds = array<i64: 32, 32>}, {pipeline_mode = #tpu.pipeline_mode<synchronous>, transform_indices = @transform_3, window_bounds = array<i64: 1, 32>}, {pipeline_mode = #tpu.pipeline_mode<synchronous>, transform_indices = @transform_4, window_bounds = array<i64: 1, 32>}]} {
    %c0_i32 = arith.constant 0 : i32
    %0 = arith.cmpi eq, %arg0, %c0_i32 : i32
    %1 = arith.extui %0 : i1 to i32
    %c0_i32_0 = arith.constant 0 : i32
    %2 = arith.cmpi ne, %1, %c0_i32_0 : i32
    scf.if %2 {
      %cst_22 = arith.constant 0.000000e+00 : f32
      %37 = vector.broadcast %cst_22 : f32 to vector<1x32xf32>
      %c0_23 = arith.constant 0 : index
      %c0_24 = arith.constant 0 : index
      %38 = vector.load %arg4[%c0_23, %c0_24] : memref<1x32xf32, #tpu.memory_space<vmem>>, vector<1x32xf32>
      tpu.vector_store %arg4[%c0_23, %c0_24], %37 {strides = array<i32>} : memref<1x32xf32, #tpu.memory_space<vmem>>, vector<1x32xf32>,
      %cst_25 = arith.constant 0.000000e+00 : f32
      %39 = vector.broadcast %cst_25 : f32 to vector<1x32xf32>
      %c0_26 = arith.constant 0 : index
      %c0_27 = arith.constant 0 : index
      %40 = vector.load %arg5[%c0_26, %c0_27] : memref<1x32xf32, #tpu.memory_space<vmem>>, vector<1x32xf32>
      tpu.vector_store %arg5[%c0_26, %c0_27], %39 {strides = array<i32>} : memref<1x32xf32, #tpu.memory_space<vmem>>, vector<1x32xf32>,
    } else {
    }
    %c0 = arith.constant 0 : index
    %c0_1 = arith.constant 0 : index
    %3 = vector.load %arg1[%c0, %c0_1] : memref<32x144xbf16, #tpu.memory_space<vmem>>, vector<32x144xbf16>
    %c0_2 = arith.constant 0 : index
    %c0_3 = arith.constant 0 : index
    %4 = vector.load %arg2[%c0_2, %c0_3] : memref<144x32xbf16, #tpu.memory_space<vmem>>, vector<144x32xbf16>
    %cst = arith.constant dense<0.000000e+00> : vector<32x32xf32>
    %5 = tpu.matmul %3, %4, %cst {dimension_numbers = #tpu.dot_dimension_numbers<[1], [0], [0], [1], [0, 0, 1, 1], [], []>} : vector<32x144xbf16>, vector<144x32xbf16>, vector<32x32xf32> -> vector<32x32xf32>
    %6 = arith.truncf %5 : vector<32x32xf32> to vector<32x32xbf16>
    %c0_4 = arith.constant 0 : index
    %c0_5 = arith.constant 0 : index
    %7 = vector.load %arg3[%c0_4, %c0_5] : memref<32x32xbf16, #tpu.memory_space<vmem>>, vector<32x32xbf16>
    tpu.vector_store %arg3[%c0_4, %c0_5], %6 {strides = array<i32>} : memref<32x32xbf16, #tpu.memory_space<vmem>>, vector<32x32xbf16>,
    %cst_6 = arith.constant dense<0.000000e+00> : vector<32xf32>
    %8 = vector.multi_reduction <add>, %5, %cst_6 [0] : vector<32x32xf32> to vector<32xf32>
    %9 = vector.shape_cast %8 : vector<32xf32> to vector<1x32xf32>
    %cst_7 = arith.constant 3.200000e+01 : f32
    %10 = vector.broadcast %cst_7 : f32 to vector<1x32xf32>
    %11 = arith.divf %9, %10 : vector<1x32xf32>
    %12 = vector.broadcast %11 : vector<1x32xf32> to vector<32x32xf32>
    %13 = arith.subf %5, %12 : vector<32x32xf32>
    %14 = arith.mulf %13, %13 : vector<32x32xf32>
    %cst_8 = arith.constant dense<0.000000e+00> : vector<32xf32>
    %15 = vector.multi_reduction <add>, %14, %cst_8 [0] : vector<32x32xf32> to vector<32xf32>
    %16 = vector.shape_cast %15 : vector<32xf32> to vector<1x32xf32>
    %c32_i32 = arith.constant 32 : i32
    %17 = arith.muli %arg0, %c32_i32 : i32
    %18 = arith.sitofp %17 : i32 to f32
    %cst_9 = arith.constant 3.200000e+01 : f32
    %19 = arith.addf %18, %cst_9 : f32
    %c0_10 = arith.constant 0 : index
    %c0_11 = arith.constant 0 : index
    %20 = vector.load %arg4[%c0_10, %c0_11] : memref<1x32xf32, #tpu.memory_space<vmem>>, vector<1x32xf32>
    %21 = arith.subf %11, %20 : vector<1x32xf32>
    %c0_12 = arith.constant 0 : index
    %c0_13 = arith.constant 0 : index
    %22 = vector.load %arg4[%c0_12, %c0_13] : memref<1x32xf32, #tpu.memory_space<vmem>>, vector<1x32xf32>
    %cst_14 = arith.constant 3.200000e+01 : f32
    %23 = arith.divf %cst_14, %19 : f32
    %24 = vector.broadcast %23 : f32 to vector<1x32xf32>
    %25 = arith.mulf %21, %24 : vector<1x32xf32>
    %26 = arith.addf %22, %25 : vector<1x32xf32>
    %c0_15 = arith.constant 0 : index
    %c0_16 = arith.constant 0 : index
    %27 = vector.load %arg4[%c0_15, %c0_16] : memref<1x32xf32, #tpu.memory_space<vmem>>, vector<1x32xf32>
    tpu.vector_store %arg4[%c0_15, %c0_16], %26 {strides = array<i32>} : memref<1x32xf32, #tpu.memory_space<vmem>>, vector<1x32xf32>,
    %c0_17 = arith.constant 0 : index
    %c0_18 = arith.constant 0 : index
    %28 = vector.load %arg5[%c0_17, %c0_18] : memref<1x32xf32, #tpu.memory_space<vmem>>, vector<1x32xf32>
    %29 = arith.addf %28, %16 : vector<1x32xf32>
    %30 = arith.mulf %21, %21 : vector<1x32xf32>
    %cst_19 = arith.constant 3.200000e+01 : f32
    %31 = arith.mulf %18, %cst_19 : f32
    %32 = arith.divf %31, %19 : f32
    %33 = vector.broadcast %32 : f32 to vector<1x32xf32>
    %34 = arith.mulf %30, %33 : vector<1x32xf32>
    %35 = arith.addf %29, %34 : vector<1x32xf32>
    %c0_20 = arith.constant 0 : index
    %c0_21 = arith.constant 0 : index
    %36 = vector.load %arg5[%c0_20, %c0_21] : memref<1x32xf32, #tpu.memory_space<vmem>>, vector<1x32xf32>
    tpu.vector_store %arg5[%c0_20, %c0_21], %35 {strides = array<i32>} : memref<1x32xf32, #tpu.memory_space<vmem>>, vector<1x32xf32>,
    return
  }
  func.func @transform_0(%arg0: i32) -> (i32, i32) {
    %c0_i32 = arith.constant 0 : i32
    %c0_i32_0 = arith.constant 0 : i32
    return %arg0, %c0_i32 : i32, i32
  }
  func.func @transform_1(%arg0: i32) -> (i32, i32) {
    %c0_i32 = arith.constant 0 : i32
    %c0_i32_0 = arith.constant 0 : i32
    %c0_i32_1 = arith.constant 0 : i32
    return %c0_i32, %c0_i32_0 : i32, i32
  }
  func.func @transform_2(%arg0: i32) -> (i32, i32) {
    %c0_i32 = arith.constant 0 : i32
    %c0_i32_0 = arith.constant 0 : i32
    return %arg0, %c0_i32 : i32, i32
  }
  func.func @transform_3(%arg0: i32) -> (i32, i32) {
    %c0_i32 = arith.constant 0 : i32
    %c0_i32_0 = arith.constant 0 : i32
    %c0_i32_1 = arith.constant 0 : i32
    return %c0_i32, %c0_i32_0 : i32, i32
  }
  func.func @transform_4(%arg0: i32) -> (i32, i32) {
    %c0_i32 = arith.constant 0 : i32
    %c0_i32_0 = arith.constant 0 : i32
    %c0_i32_1 = arith.constant 0 : i32
    return %c0_i32, %c0_i32_0 : i32, i32
  }
}

module attributes {stable_mosaic.version = 11 : i64} {
  func.func @_bn_relu_kernel(%arg0: i32, %arg1: memref<32x32xbf16, #tpu.memory_space<vmem>>, %arg2: memref<1x32xf32, #tpu.memory_space<vmem>>, %arg3: memref<1x32xf32, #tpu.memory_space<vmem>>, %arg4: memref<32x32xbf16, #tpu.memory_space<vmem>>) attributes {dimension_semantics = [#tpu.dimension_semantics<parallel>], iteration_bounds = array<i64: 1>, scalar_prefetch = 0 : i64, scratch_operands = 0 : i64, tpu.core_type = #tpu.core_type<tc>, window_params = [{transform_indices = @transform_0, window_bounds = array<i64: 32, 32>}, {pipeline_mode = #tpu.pipeline_mode<synchronous>, transform_indices = @transform_1, window_bounds = array<i64: 1, 32>}, {pipeline_mode = #tpu.pipeline_mode<synchronous>, transform_indices = @transform_2, window_bounds = array<i64: 1, 32>}, {transform_indices = @transform_3, window_bounds = array<i64: 32, 32>}]} {
    %c0 = arith.constant 0 : index
    %c0_0 = arith.constant 0 : index
    %0 = vector.load %arg1[%c0, %c0_0] : memref<32x32xbf16, #tpu.memory_space<vmem>>, vector<32x32xbf16>
    %1 = arith.extf %0 : vector<32x32xbf16> to vector<32x32xf32>
    %c0_1 = arith.constant 0 : index
    %c0_2 = arith.constant 0 : index
    %2 = vector.load %arg2[%c0_1, %c0_2] : memref<1x32xf32, #tpu.memory_space<vmem>>, vector<1x32xf32>
    %3 = vector.broadcast %2 : vector<1x32xf32> to vector<32x32xf32>
    %4 = arith.mulf %1, %3 : vector<32x32xf32>
    %c0_3 = arith.constant 0 : index
    %c0_4 = arith.constant 0 : index
    %5 = vector.load %arg3[%c0_3, %c0_4] : memref<1x32xf32, #tpu.memory_space<vmem>>, vector<1x32xf32>
    %6 = vector.broadcast %5 : vector<1x32xf32> to vector<32x32xf32>
    %7 = arith.addf %4, %6 : vector<32x32xf32>
    %cst = arith.constant 0.000000e+00 : f32
    %8 = vector.broadcast %cst : f32 to vector<32x32xf32>
    %9 = arith.maximumf %7, %8 : vector<32x32xf32>
    %10 = arith.truncf %9 : vector<32x32xf32> to vector<32x32xbf16>
    %c0_5 = arith.constant 0 : index
    %c0_6 = arith.constant 0 : index
    %11 = vector.load %arg4[%c0_5, %c0_6] : memref<32x32xbf16, #tpu.memory_space<vmem>>, vector<32x32xbf16>
    tpu.vector_store %arg4[%c0_5, %c0_6], %10 {strides = array<i32>} : memref<32x32xbf16, #tpu.memory_space<vmem>>, vector<32x32xbf16>,
    return
  }
  func.func @transform_0(%arg0: i32) -> (i32, i32) {
    %c0_i32 = arith.constant 0 : i32
    %c0_i32_0 = arith.constant 0 : i32
    return %arg0, %c0_i32 : i32, i32
  }
  func.func @transform_1(%arg0: i32) -> (i32, i32) {
    %c0_i32 = arith.constant 0 : i32
    %c0_i32_0 = arith.constant 0 : i32
    %c0_i32_1 = arith.constant 0 : i32
    return %c0_i32, %c0_i32_0 : i32, i32
  }
  func.func @transform_2(%arg0: i32) -> (i32, i32) {
    %c0_i32 = arith.constant 0 : i32
    %c0_i32_0 = arith.constant 0 : i32
    %c0_i32_1 = arith.constant 0 : i32
    return %c0_i32, %c0_i32_0 : i32, i32
  }
  func.func @transform_3(%arg0: i32) -> (i32, i32) {
    %c0_i32 = arith.constant 0 : i32
    %c0_i32_0 = arith.constant 0 : i32
    return %arg0, %c0_i32 : i32, i32
  }
}

module attributes {stable_mosaic.version = 11 : i64} {
  func.func @_convt_pass1_kernel(%arg0: i32, %arg1: memref<128x72xbf16, #tpu.memory_space<vmem>>, %arg2: memref<72x16xbf16, #tpu.memory_space<vmem>>, %arg3: memref<128x16xbf16, #tpu.memory_space<vmem>>, %arg4: memref<1x16xf32, #tpu.memory_space<vmem>>, %arg5: memref<1x16xf32, #tpu.memory_space<vmem>>) attributes {dimension_semantics = [#tpu.dimension_semantics<arbitrary>], iteration_bounds = array<i64: 1>, scalar_prefetch = 0 : i64, scratch_operands = 0 : i64, tpu.core_type = #tpu.core_type<tc>, window_params = [{transform_indices = @transform_0, window_bounds = array<i64: 128, 72>}, {pipeline_mode = #tpu.pipeline_mode<synchronous>, transform_indices = @transform_1, window_bounds = array<i64: 72, 16>}, {transform_indices = @transform_2, window_bounds = array<i64: 128, 16>}, {pipeline_mode = #tpu.pipeline_mode<synchronous>, transform_indices = @transform_3, window_bounds = array<i64: 1, 16>}, {pipeline_mode = #tpu.pipeline_mode<synchronous>, transform_indices = @transform_4, window_bounds = array<i64: 1, 16>}]} {
    %c0_i32 = arith.constant 0 : i32
    %0 = arith.cmpi eq, %arg0, %c0_i32 : i32
    %1 = arith.extui %0 : i1 to i32
    %c0_i32_0 = arith.constant 0 : i32
    %2 = arith.cmpi ne, %1, %c0_i32_0 : i32
    scf.if %2 {
      %cst_22 = arith.constant 0.000000e+00 : f32
      %37 = vector.broadcast %cst_22 : f32 to vector<1x16xf32>
      %c0_23 = arith.constant 0 : index
      %c0_24 = arith.constant 0 : index
      %38 = vector.load %arg4[%c0_23, %c0_24] : memref<1x16xf32, #tpu.memory_space<vmem>>, vector<1x16xf32>
      tpu.vector_store %arg4[%c0_23, %c0_24], %37 {strides = array<i32>} : memref<1x16xf32, #tpu.memory_space<vmem>>, vector<1x16xf32>,
      %cst_25 = arith.constant 0.000000e+00 : f32
      %39 = vector.broadcast %cst_25 : f32 to vector<1x16xf32>
      %c0_26 = arith.constant 0 : index
      %c0_27 = arith.constant 0 : index
      %40 = vector.load %arg5[%c0_26, %c0_27] : memref<1x16xf32, #tpu.memory_space<vmem>>, vector<1x16xf32>
      tpu.vector_store %arg5[%c0_26, %c0_27], %39 {strides = array<i32>} : memref<1x16xf32, #tpu.memory_space<vmem>>, vector<1x16xf32>,
    } else {
    }
    %c0 = arith.constant 0 : index
    %c0_1 = arith.constant 0 : index
    %3 = vector.load %arg1[%c0, %c0_1] : memref<128x72xbf16, #tpu.memory_space<vmem>>, vector<128x72xbf16>
    %c0_2 = arith.constant 0 : index
    %c0_3 = arith.constant 0 : index
    %4 = vector.load %arg2[%c0_2, %c0_3] : memref<72x16xbf16, #tpu.memory_space<vmem>>, vector<72x16xbf16>
    %cst = arith.constant dense<0.000000e+00> : vector<128x16xf32>
    %5 = tpu.matmul %3, %4, %cst {dimension_numbers = #tpu.dot_dimension_numbers<[1], [0], [0], [1], [0, 0, 1, 1], [], []>} : vector<128x72xbf16>, vector<72x16xbf16>, vector<128x16xf32> -> vector<128x16xf32>
    %6 = arith.truncf %5 : vector<128x16xf32> to vector<128x16xbf16>
    %c0_4 = arith.constant 0 : index
    %c0_5 = arith.constant 0 : index
    %7 = vector.load %arg3[%c0_4, %c0_5] : memref<128x16xbf16, #tpu.memory_space<vmem>>, vector<128x16xbf16>
    tpu.vector_store %arg3[%c0_4, %c0_5], %6 {strides = array<i32>} : memref<128x16xbf16, #tpu.memory_space<vmem>>, vector<128x16xbf16>,
    %cst_6 = arith.constant dense<0.000000e+00> : vector<16xf32>
    %8 = vector.multi_reduction <add>, %5, %cst_6 [0] : vector<128x16xf32> to vector<16xf32>
    %9 = vector.shape_cast %8 : vector<16xf32> to vector<1x16xf32>
    %cst_7 = arith.constant 1.280000e+02 : f32
    %10 = vector.broadcast %cst_7 : f32 to vector<1x16xf32>
    %11 = arith.divf %9, %10 : vector<1x16xf32>
    %12 = vector.broadcast %11 : vector<1x16xf32> to vector<128x16xf32>
    %13 = arith.subf %5, %12 : vector<128x16xf32>
    %14 = arith.mulf %13, %13 : vector<128x16xf32>
    %cst_8 = arith.constant dense<0.000000e+00> : vector<16xf32>
    %15 = vector.multi_reduction <add>, %14, %cst_8 [0] : vector<128x16xf32> to vector<16xf32>
    %16 = vector.shape_cast %15 : vector<16xf32> to vector<1x16xf32>
    %c128_i32 = arith.constant 128 : i32
    %17 = arith.muli %arg0, %c128_i32 : i32
    %18 = arith.sitofp %17 : i32 to f32
    %cst_9 = arith.constant 1.280000e+02 : f32
    %19 = arith.addf %18, %cst_9 : f32
    %c0_10 = arith.constant 0 : index
    %c0_11 = arith.constant 0 : index
    %20 = vector.load %arg4[%c0_10, %c0_11] : memref<1x16xf32, #tpu.memory_space<vmem>>, vector<1x16xf32>
    %21 = arith.subf %11, %20 : vector<1x16xf32>
    %c0_12 = arith.constant 0 : index
    %c0_13 = arith.constant 0 : index
    %22 = vector.load %arg4[%c0_12, %c0_13] : memref<1x16xf32, #tpu.memory_space<vmem>>, vector<1x16xf32>
    %cst_14 = arith.constant 1.280000e+02 : f32
    %23 = arith.divf %cst_14, %19 : f32
    %24 = vector.broadcast %23 : f32 to vector<1x16xf32>
    %25 = arith.mulf %21, %24 : vector<1x16xf32>
    %26 = arith.addf %22, %25 : vector<1x16xf32>
    %c0_15 = arith.constant 0 : index
    %c0_16 = arith.constant 0 : index
    %27 = vector.load %arg4[%c0_15, %c0_16] : memref<1x16xf32, #tpu.memory_space<vmem>>, vector<1x16xf32>
    tpu.vector_store %arg4[%c0_15, %c0_16], %26 {strides = array<i32>} : memref<1x16xf32, #tpu.memory_space<vmem>>, vector<1x16xf32>,
    %c0_17 = arith.constant 0 : index
    %c0_18 = arith.constant 0 : index
    %28 = vector.load %arg5[%c0_17, %c0_18] : memref<1x16xf32, #tpu.memory_space<vmem>>, vector<1x16xf32>
    %29 = arith.addf %28, %16 : vector<1x16xf32>
    %30 = arith.mulf %21, %21 : vector<1x16xf32>
    %cst_19 = arith.constant 1.280000e+02 : f32
    %31 = arith.mulf %18, %cst_19 : f32
    %32 = arith.divf %31, %19 : f32
    %33 = vector.broadcast %32 : f32 to vector<1x16xf32>
    %34 = arith.mulf %30, %33 : vector<1x16xf32>
    %35 = arith.addf %29, %34 : vector<1x16xf32>
    %c0_20 = arith.constant 0 : index
    %c0_21 = arith.constant 0 : index
    %36 = vector.load %arg5[%c0_20, %c0_21] : memref<1x16xf32, #tpu.memory_space<vmem>>, vector<1x16xf32>
    tpu.vector_store %arg5[%c0_20, %c0_21], %35 {strides = array<i32>} : memref<1x16xf32, #tpu.memory_space<vmem>>, vector<1x16xf32>,
    return
  }
  func.func @transform_0(%arg0: i32) -> (i32, i32) {
    %c0_i32 = arith.constant 0 : i32
    %c0_i32_0 = arith.constant 0 : i32
    return %arg0, %c0_i32 : i32, i32
  }
  func.func @transform_1(%arg0: i32) -> (i32, i32) {
    %c0_i32 = arith.constant 0 : i32
    %c0_i32_0 = arith.constant 0 : i32
    %c0_i32_1 = arith.constant 0 : i32
    return %c0_i32, %c0_i32_0 : i32, i32
  }
  func.func @transform_2(%arg0: i32) -> (i32, i32) {
    %c0_i32 = arith.constant 0 : i32
    %c0_i32_0 = arith.constant 0 : i32
    return %arg0, %c0_i32 : i32, i32
  }
  func.func @transform_3(%arg0: i32) -> (i32, i32) {
    %c0_i32 = arith.constant 0 : i32
    %c0_i32_0 = arith.constant 0 : i32
    %c0_i32_1 = arith.constant 0 : i32
    return %c0_i32, %c0_i32_0 : i32, i32
  }
  func.func @transform_4(%arg0: i32) -> (i32, i32) {
    %c0_i32 = arith.constant 0 : i32
    %c0_i32_0 = arith.constant 0 : i32
    %c0_i32_1 = arith.constant 0 : i32
    return %c0_i32, %c0_i32_0 : i32, i32
  }
}

module attributes {stable_mosaic.version = 11 : i64} {
  func.func @_bn_relu_kernel(%arg0: i32, %arg1: memref<128x16xbf16, #tpu.memory_space<vmem>>, %arg2: memref<1x16xf32, #tpu.memory_space<vmem>>, %arg3: memref<1x16xf32, #tpu.memory_space<vmem>>, %arg4: memref<128x16xbf16, #tpu.memory_space<vmem>>) attributes {dimension_semantics = [#tpu.dimension_semantics<parallel>], iteration_bounds = array<i64: 1>, scalar_prefetch = 0 : i64, scratch_operands = 0 : i64, tpu.core_type = #tpu.core_type<tc>, window_params = [{transform_indices = @transform_0, window_bounds = array<i64: 128, 16>}, {pipeline_mode = #tpu.pipeline_mode<synchronous>, transform_indices = @transform_1, window_bounds = array<i64: 1, 16>}, {pipeline_mode = #tpu.pipeline_mode<synchronous>, transform_indices = @transform_2, window_bounds = array<i64: 1, 16>}, {transform_indices = @transform_3, window_bounds = array<i64: 128, 16>}]} {
    %c0 = arith.constant 0 : index
    %c0_0 = arith.constant 0 : index
    %0 = vector.load %arg1[%c0, %c0_0] : memref<128x16xbf16, #tpu.memory_space<vmem>>, vector<128x16xbf16>
    %1 = arith.extf %0 : vector<128x16xbf16> to vector<128x16xf32>
    %c0_1 = arith.constant 0 : index
    %c0_2 = arith.constant 0 : index
    %2 = vector.load %arg2[%c0_1, %c0_2] : memref<1x16xf32, #tpu.memory_space<vmem>>, vector<1x16xf32>
    %3 = vector.broadcast %2 : vector<1x16xf32> to vector<128x16xf32>
    %4 = arith.mulf %1, %3 : vector<128x16xf32>
    %c0_3 = arith.constant 0 : index
    %c0_4 = arith.constant 0 : index
    %5 = vector.load %arg3[%c0_3, %c0_4] : memref<1x16xf32, #tpu.memory_space<vmem>>, vector<1x16xf32>
    %6 = vector.broadcast %5 : vector<1x16xf32> to vector<128x16xf32>
    %7 = arith.addf %4, %6 : vector<128x16xf32>
    %cst = arith.constant 0.000000e+00 : f32
    %8 = vector.broadcast %cst : f32 to vector<128x16xf32>
    %9 = arith.maximumf %7, %8 : vector<128x16xf32>
    %10 = arith.truncf %9 : vector<128x16xf32> to vector<128x16xbf16>
    %c0_5 = arith.constant 0 : index
    %c0_6 = arith.constant 0 : index
    %11 = vector.load %arg4[%c0_5, %c0_6] : memref<128x16xbf16, #tpu.memory_space<vmem>>, vector<128x16xbf16>
    tpu.vector_store %arg4[%c0_5, %c0_6], %10 {strides = array<i32>} : memref<128x16xbf16, #tpu.memory_space<vmem>>, vector<128x16xbf16>,
    return
  }
  func.func @transform_0(%arg0: i32) -> (i32, i32) {
    %c0_i32 = arith.constant 0 : i32
    %c0_i32_0 = arith.constant 0 : i32
    return %arg0, %c0_i32 : i32, i32
  }
  func.func @transform_1(%arg0: i32) -> (i32, i32) {
    %c0_i32 = arith.constant 0 : i32
    %c0_i32_0 = arith.constant 0 : i32
    %c0_i32_1 = arith.constant 0 : i32
    return %c0_i32, %c0_i32_0 : i32, i32
  }
  func.func @transform_2(%arg0: i32) -> (i32, i32) {
    %c0_i32 = arith.constant 0 : i32
    %c0_i32_0 = arith.constant 0 : i32
    %c0_i32_1 = arith.constant 0 : i32
    return %c0_i32, %c0_i32_0 : i32, i32
  }
  func.func @transform_3(%arg0: i32) -> (i32, i32) {
    %c0_i32 = arith.constant 0 : i32
    %c0_i32_0 = arith.constant 0 : i32
    return %arg0, %c0_i32 : i32, i32
  }
}

module attributes {stable_mosaic.version = 11 : i64} {
  func.func @_conv1x1_kernel(%arg0: i32, %arg1: i32, %arg2: memref<1x256x4xbf16, #tpu.memory_space<vmem>>, %arg3: memref<8x4xbf16, #tpu.memory_space<vmem>>, %arg4: memref<8x1xf32, #tpu.memory_space<vmem>>, %arg5: memref<1x8x256xf32, #tpu.memory_space<vmem>>) attributes {dimension_semantics = [#tpu.dimension_semantics<parallel>, #tpu.dimension_semantics<parallel>], iteration_bounds = array<i64: 2, 1>, scalar_prefetch = 0 : i64, scratch_operands = 0 : i64, tpu.core_type = #tpu.core_type<tc>, window_params = [{transform_indices = @transform_0, window_bounds = array<i64: 1, 256, 4>}, {pipeline_mode = #tpu.pipeline_mode<synchronous>, transform_indices = @transform_1, window_bounds = array<i64: 8, 4>}, {pipeline_mode = #tpu.pipeline_mode<synchronous>, transform_indices = @transform_2, window_bounds = array<i64: 8, 1>}, {transform_indices = @transform_3, window_bounds = array<i64: 1, 8, 256>}]} {
    %c0 = arith.constant 0 : index
    %c0_0 = arith.constant 0 : index
    %c0_1 = arith.constant 0 : index
    %0 = vector.load %arg2[%c0, %c0_0, %c0_1] : memref<1x256x4xbf16, #tpu.memory_space<vmem>>, vector<1x256x4xbf16>
    %1 = vector.shape_cast %0 : vector<1x256x4xbf16> to vector<256x4xbf16>
    %c0_2 = arith.constant 0 : index
    %c0_3 = arith.constant 0 : index
    %2 = vector.load %arg3[%c0_2, %c0_3] : memref<8x4xbf16, #tpu.memory_space<vmem>>, vector<8x4xbf16>
    %cst = arith.constant dense<0.000000e+00> : vector<8x256xf32>
    %3 = tpu.matmul %2, %1, %cst {dimension_numbers = #tpu.dot_dimension_numbers<[1], [1], [0], [0], [0, 0, 1, 0], [], []>} : vector<8x4xbf16>, vector<256x4xbf16>, vector<8x256xf32> -> vector<8x256xf32>
    %c0_4 = arith.constant 0 : index
    %c0_5 = arith.constant 0 : index
    %4 = vector.load %arg4[%c0_4, %c0_5] : memref<8x1xf32, #tpu.memory_space<vmem>>, vector<8x1xf32>
    %5 = vector.broadcast %4 : vector<8x1xf32> to vector<8x256xf32>
    %6 = arith.addf %3, %5 : vector<8x256xf32>
    %7 = math.tanh %6 : vector<8x256xf32>
    %c0_6 = arith.constant 0 : index
    %c0_7 = arith.constant 0 : index
    %c0_8 = arith.constant 0 : index
    %8 = vector.load %arg5[%c0_6, %c0_7, %c0_8] : memref<1x8x256xf32, #tpu.memory_space<vmem>>, vector<1x8x256xf32>
    %9 = vector.shape_cast %8 : vector<1x8x256xf32> to vector<8x256xf32>
    %10 = vector.shape_cast %7 : vector<8x256xf32> to vector<1x8x256xf32>
    tpu.vector_store %arg5[%c0_6, %c0_7, %c0_8], %10 {strides = array<i32>} : memref<1x8x256xf32, #tpu.memory_space<vmem>>, vector<1x8x256xf32>,
    return
  }
  func.func @transform_0(%arg0: i32, %arg1: i32) -> (i32, i32, i32) {
    %c0_i32 = arith.constant 0 : i32
    %c0_i32_0 = arith.constant 0 : i32
    return %arg0, %arg1, %c0_i32 : i32, i32, i32
  }
  func.func @transform_1(%arg0: i32, %arg1: i32) -> (i32, i32) {
    %c0_i32 = arith.constant 0 : i32
    %c0_i32_0 = arith.constant 0 : i32
    %c0_i32_1 = arith.constant 0 : i32
    return %c0_i32, %c0_i32_0 : i32, i32
  }
  func.func @transform_2(%arg0: i32, %arg1: i32) -> (i32, i32) {
    %c0_i32 = arith.constant 0 : i32
    %c0_i32_0 = arith.constant 0 : i32
    %c0_i32_1 = arith.constant 0 : i32
    return %c0_i32, %c0_i32_0 : i32, i32
  }
  func.func @transform_3(%arg0: i32, %arg1: i32) -> (i32, i32, i32) {
    %c0_i32 = arith.constant 0 : i32
    %c0_i32_0 = arith.constant 0 : i32
    return %arg0, %c0_i32, %arg1 : i32, i32, i32
  }
}

</mosaic_0001>

<llo_original>
// kernel: tile.23
$region0: #{tile.23}
  #allocation0 [shape = 's32[1]{0}', space=sflag, size = 0x4, scoped, tag = 'scoped memory for tile.23']
  %s0 = inlined_call_operand.vmem [shape: f32[8], index: 0, kind: input, shape index: {}]
  %s1 = inlined_call_operand.vmem [shape: f32[4,8], index: 1, kind: output, shape index: {}]
  // Predicated region
  $region2: #{tile.23} parent=0 // pred_check
    _
  $region3: #{tile.23} parent=0 // pred_check_branch
    %3 = sbr.rel (0) target = $region5
  $region4: #{tile.23} parent=0 // pred_region
    _
  $region5: #{tile.23} parent=0 // pred_fallthru
    _
  %v4 = vld [vmem:[%s0] ss:$0 sm:$0xff]
  %5 = vst [vmem:[%s1] sm:$0xf] %v4

// kernel: decoder_forward.6
$region0: #{decoder_forward.6}
  #allocation0 [shape = 'u32[]', space=smem, size = 0x4, offset = 0x4, fixed_abs, tag = 'smem constant byte address 0x4 - core index']
  #allocation1 [shape = 'u32[144,128]{1,0:T(1,128)}', space=vmem, size = 0x12000, scoped, tag = 'internal scratch']
  %s0 = inlined_call_operand.vmem [shape: bf16[2,32], index: 0, kind: input, shape index: {}]
  %s1 = inlined_call_operand.vmem [shape: bf16[32,256], index: 1, kind: input, shape index: {}]
  %s2 = inlined_call_operand.vmem [shape: f32[1,256], index: 2, kind: input, shape index: {}]
  %s3 = inlined_call_operand.vmem [shape: bf16[2,256], index: 3, kind: output, shape index: {}]
  %s4 = sld [smem:[#allocation0]]
  $region22: #{decoder_forward.6} parent=0
    _
  %s6 = ssub.s32 1, %s4
  %s7 = scalar_select 0, %s6, %s4
  // Predicated region
  $region2: #{decoder_forward.6} parent=0 // pred_check
    _
  $region3: #{decoder_forward.6} parent=0 // pred_check_branch
    %9 = sbr.rel (0) target = $region5
  $region4: #{decoder_forward.6} parent=0 // pred_region
    _
  $region5: #{decoder_forward.6} parent=0 // pred_fallthru
    _
  // Predicated region
  $region6: #{decoder_forward.6} parent=0 // pred_check
    _
  $region7: #{decoder_forward.6} parent=0 // pred_check_branch
    %11 = sbr.rel (0) target = $region9
  $region8: #{decoder_forward.6} parent=0 // pred_region
    _
  $region9: #{decoder_forward.6} parent=0 // pred_fallthru
    _
  // Predicated region
  $region10: #{decoder_forward.6} parent=0 // pred_check
    _
  $region11: #{decoder_forward.6} parent=0 // pred_check_branch
    %13 = sbr.rel (0) target = $region13
  $region12: #{decoder_forward.6} parent=0 // pred_region
    _
  $region13: #{decoder_forward.6} parent=0 // pred_fallthru
    _
  %v15 = vld [vmem:[%s0] sm:$0x1]
  %v16 = vld [vmem:[%s1] sm:$0xff]
  %v17 = vld [vmem:[%s1 + $0x8] sm:$0xff]
  %v18 = vld [vmem:[%s1 + $0x10] sm:$0xff]
  %v19 = vld [vmem:[%s1 + $0x18] sm:$0xff]
  %v20 = vld [vmem:[%s2] sm:$0x3]
  %v22 = vlaneseq
  %v23 = vshrl.u32 %v22, 7
  %v24 = vsub.s32 0, %v23
  %v25 = vrot.slane %v20, %v24
  %v26 = vlaneseq
  %v27 = vshrl.u32 %v26, 7
  %v28 = vsub.s32 1, %v27
  %v29 = vrot.slane %v20, %v28
  %v36 = vunpack.c.l.b16 %v16
  %v37 = vunpack.c.h.b16 %v16
  %v38 = vunpack.c.l.b16 %v17
  %v39 = vunpack.c.h.b16 %v17
  %v40 = vunpack.c.l.b16 %v18
  %v41 = vunpack.c.h.b16 %v18
  %v42 = vunpack.c.l.b16 %v19
  %v43 = vunpack.c.h.b16 %v19
  %v44 = vpack.c.b16 %v38, %v36
  %v45 = vpack.c.b16 %v39, %v37
  %v46 = vpack.c.b16 %v42, %v40
  %v47 = vpack.c.b16 %v43, %v41
  %vm52 = vcmask 261120
  %v54 = vsel %vm52, %v15, 0
  %56 = vmatprep.subr.bf16.mxu0 %v45
  %57 = vmatpush1.bf16.msra.mxu0 %v44
  %58 = vmatprep.subr.bf16.mxu0 %v47
  %59 = vmatpush1.bf16.msra.mxu0 %v46
  %60 = vmatprep.subr.bf16.mxu0 0
  %61 = vmatpush1.bf16.msra.mxu0 0
  %62 = vmatprep.subr.bf16.mxu0 0
  %63 = vmatpush1.bf16.msra.mxu0 0
  %64 = vmatprep.subr.bf16.mxu0 0
  %65 = vmatpush1.bf16.msra.mxu0 0
  %66 = vmatprep.subr.bf16.mxu0 0
  %67 = vmatpush1.bf16.msra.mxu0 0
  %68 = vmatprep.subr.bf16.mxu0 0
  %69 = vmatpush1.bf16.msra.mxu0 0
  %70 = vmatprep.subr.bf16.mxu0 0
  %71 = vmatpush1.bf16.msra.mxu0 0
  %72 = vmatprep.subr.bf16.mxu0 0
  %73 = vmatpush1.bf16.msra.mxu0 0
  %74 = vmatprep.subr.bf16.mxu0 0
  %75 = vmatpush1.bf16.msra.mxu0 0
  %76 = vmatprep.subr.bf16.mxu0 0
  %77 = vmatpush1.bf16.msra.mxu0 0
  %78 = vmatprep.subr.bf16.mxu0 0
  %79 = vmatpush1.bf16.msra.mxu0 0
  %80 = vmatprep.subr.bf16.mxu0 0
  %81 = vmatpush1.bf16.msra.mxu0 0
  %82 = vmatprep.subr.bf16.mxu0 0
  %83 = vmatpush1.bf16.msra.mxu0 0
  %84 = vmatprep.subr.bf16.mxu0 0
  %85 = vmatpush1.bf16.msra.mxu0 0
  %86 = vmatprep.subr.bf16.mxu0 0
  %87 = vmatpush1.bf16.msra.mxu0 0
  %88 = vmatprep.mubr.bf16.mxu0 0
  %89 = vmatmul.mubr.bf16.gmra.mrb[0].mxu0 %v54
  %v90 = vpop.f32.mrb[0].mxu0
  %v91 = vadd.f32 %v25, %v90
  %v92 = vpop.f32.mrb[0].mxu0
  %v93 = vadd.f32 %v29, %v92
  %v94 = vpop.f32.mrb[0].mxu0
  %v95 = vpop.f32.mrb[0].mxu0
  %96 = vdwg.mxu0
  %v97 = vpack.c.bf16 %v91, %v91
  %v98 = vpack.c.bf16 %v93, %v93
  %v101 = vcombine.low %v97, %v98
  %v103 = vunpack.c.l.s4 1966171168
  %v104 = vunpack.c.0.s8 %v103
  %v105 = vlaneseq
  %v106 = vshrl.u32 %v105, 7
  %v107 = vsub.s32 %v104, %v106
  %v108 = vrot.slane %v101, %v107
  %v110 = vunpack.c.l.s4 1966171168
  %v111 = vunpack.c.0.s8 %v110
  %v112 = vlaneseq
  %v113 = vshrl.u32 %v112, 7
  %v114 = vsub.s32 %v111, %v113
  %v115 = vrot.slane %v108, %v114
  %117 = vst [vmem:[%s3] sm:$0x3] %v115
  // Predicated region
  $region14: #{decoder_forward.6} parent=0 // pred_check
    _
  $region15: #{decoder_forward.6} parent=0 // pred_check_branch
    %119 = sbr.rel (0) target = $region17
  $region16: #{decoder_forward.6} parent=0 // pred_region
    _
  $region17: #{decoder_forward.6} parent=0 // pred_fallthru
    _
  // Predicated region
  $region18: #{decoder_forward.6} parent=0 // pred_check
    _
  $region19: #{decoder_forward.6} parent=0 // pred_check_branch
    %121 = sbr.rel (0) target = $region21
  $region20: #{decoder_forward.6} parent=0 // pred_region
    _
  $region21: #{decoder_forward.6} parent=0 // pred_fallthru
    _

// kernel: tile.24
$region0: #{tile.24}
  %s0 = inlined_call_operand.vmem [shape: f32[4,8], index: 0, kind: input, shape index: {}]
  %s1 = inlined_call_operand.vmem [shape: f32[1,32], index: 1, kind: output, shape index: {}]
  $region1: #{tile.24} parent=0
    #allocation0 [shape = 'u8[4096]{0}', space=vmem, size = 0x1000, scoped, tag = 'scoped mem for output reshape']
    #allocation1 [shape = 'u8[4096]{0}', space=vmem, size = 0x1000, scoped, tag = 'scoped mem for input reshape']
    %s3 = sshllo.u32 0, 4
    %v4 = vld [vmem:[%s0] sm:%s3]
    %5 = vst [vmem:[#allocation1] sm:%s3] %v4
    %v6 = vld [vmem:[#allocation1] sm:$0x1]
    %vm7 = vcmask 64512
    %8 = vst.msk [vmem:[#allocation0] sm:$0x1] %vm7, %v6
    %s9 = scalar_lea.vmem [#allocation1], 3
    %v10 = vld [vmem:[%s9] sm:$0x1]
    %11 = vrot.lane.b32.xlu0 %v10, 24
    %v12 = vpop.permute.xlu0 %11
    %vm13 = vcmask 261312
    %14 = vst.msk [vmem:[#allocation0] sm:$0x1] %vm13, %v12
    %s15 = scalar_lea.vmem [#allocation1], 2
    %v16 = vld [vmem:[%s15] sm:$0x1]
    %17 = vrot.lane.b32.xlu0 %v16, 16
    %v18 = vpop.permute.xlu0 %17
    %vm19 = vcmask 195712
    %20 = vst.msk [vmem:[#allocation0] sm:$0x1] %vm19, %v18
    %s21 = scalar_lea.vmem [#allocation1], 1
    %v22 = vld [vmem:[%s21] sm:$0x1]
    %23 = vrot.lane.b32.xlu0 %v22, 8
    %v24 = vpop.permute.xlu0 %23
    %vm25 = vcmask 130112
    %26 = vst.msk [vmem:[#allocation0] sm:$0x1] %vm25, %v24
    %s28 = sshllo.u32 0, 1
    %v30 = vld [vmem:[#allocation0] sm:%s28]
    %s31 = sshllo.u32 0, 1
    %32 = vst [vmem:[%s1] sm:%s31] %v30

// kernel: decoder_forward.7
$region0: #{decoder_forward.7}
  #allocation0 [shape = 'u32[]', space=smem, size = 0x4, offset = 0x4, fixed_abs, tag = 'smem constant byte address 0x4 - core index']
  #allocation1 [shape = 'u32[144,128]{1,0:T(1,128)}', space=vmem, size = 0x12000, scoped, tag = 'internal scratch']
  %s0 = inlined_call_operand.vmem [shape: bf16[32,144], index: 0, kind: input, shape index: {}]
  %s1 = inlined_call_operand.vmem [shape: bf16[144,32], index: 1, kind: input, shape index: {}]
  %s2 = inlined_call_operand.vmem [shape: bf16[32,32], index: 2, kind: output, shape index: {0}]
  %s3 = inlined_call_operand.vmem [shape: f32[1,32], index: 3, kind: output, shape index: {1}]
  %s4 = inlined_call_operand.vmem [shape: f32[1,32], index: 4, kind: output, shape index: {2}]
  %5 = xla_tuple %s2, %s3, %s4
  %s6 = sld [smem:[#allocation0]]
  $region38: #{decoder_forward.7} parent=0
    _
  %s8 = ssub.s32 1, %s6
  %s9 = scalar_select 0, %s8, %s6
  // Predicated region
  $region2: #{decoder_forward.7} parent=0 // pred_check
    _
  $region3: #{decoder_forward.7} parent=0 // pred_check_branch
    %11 = sbr.rel (0) target = $region5
  $region4: #{decoder_forward.7} parent=0 // pred_region
    _
  $region5: #{decoder_forward.7} parent=0 // pred_fallthru
    _
  // Predicated region
  $region6: #{decoder_forward.7} parent=0 // pred_check
    _
  $region7: #{decoder_forward.7} parent=0 // pred_check_branch
    %13 = sbr.rel (0) target = $region9
  $region8: #{decoder_forward.7} parent=0 // pred_region
    _
  $region9: #{decoder_forward.7} parent=0 // pred_fallthru
    _
  %p15 = scmp.eq.s32.totalorder 0, 0
  // Predicated region
  $region10: #{decoder_forward.7} parent=0 // pred_check
    %p16 = pneg %p15
  $region11: #{decoder_forward.7} parent=0 // pred_check_branch
    %18 = sbr.rel (%p16) target = $region13
  $region12: #{decoder_forward.7} parent=0 // pred_region
    %vm19 = vcmask 253952
    %20 = vst.msk [vmem:[%s3] sm:$0x1] %vm19, 0.0
    %21 = vst.msk [vmem:[%s4] sm:$0x1] %vm19, 0.0
  $region13: #{decoder_forward.7} parent=0 // pred_fallthru
    _
  %v22 = vld [vmem:[%s0] sm:$0xff]
  %v23 = vld [vmem:[%s0 + $0x8] sm:$0xff]
  %v24 = vld [vmem:[%s0 + $0x10] sm:$0xff]
  %v25 = vld [vmem:[%s0 + $0x18] sm:$0xff]
  %v26 = vld [vmem:[%s1] sm:$0xf]
  %v27 = vld [vmem:[%s1 + $0x4] sm:$0xf]
  %v28 = vld [vmem:[%s1 + $0x8] sm:$0xf]
  %v29 = vld [vmem:[%s1 + $0xc] sm:$0xf]
  %v30 = vld [vmem:[%s1 + $0x10] sm:$0xf]
  %v31 = vld [vmem:[%s1 + $0x14] sm:$0xf]
  %v32 = vld [vmem:[%s1 + $0x18] sm:$0xf]
  %v33 = vld [vmem:[%s1 + $0x1c] sm:$0xf]
  %v34 = vld [vmem:[%s1 + $0x20] sm:$0xf]
  %v35 = vld [vmem:[%s1 + $0x24] sm:$0xf]
  %v36 = vld [vmem:[%s1 + $0x28] sm:$0xf]
  %v37 = vld [vmem:[%s1 + $0x2c] sm:$0xf]
  %v38 = vld [vmem:[%s1 + $0x30] sm:$0xf]
  %v39 = vld [vmem:[%s1 + $0x34] sm:$0xf]
  %v40 = vld [vmem:[%s1 + $0x38] sm:$0xf]
  %v41 = vld [vmem:[%s1 + $0x3c] sm:$0xf]
  %v42 = vld [vmem:[%s1 + $0x40] sm:$0xf]
  %v43 = vld [vmem:[%s1 + $0x44] sm:$0xf]
  %v48 = vunpack.c.l.b16 %v22
  %v49 = vunpack.c.h.b16 %v22
  %v50 = vunpack.c.l.b16 %v23
  %v51 = vunpack.c.h.b16 %v23
  %v52 = vunpack.c.l.b16 %v24
  %v53 = vunpack.c.h.b16 %v24
  %v54 = vunpack.c.l.b16 %v25
  %v55 = vunpack.c.h.b16 %v25
  %v56 = vpack.c.b16 %v50, %v48
  %v57 = vpack.c.b16 %v51, %v49
  %v58 = vpack.c.b16 %v54, %v52
  %v59 = vpack.c.b16 %v55, %v53
  %v80 = vunpack.c.l.b16 %v26
  %v81 = vunpack.c.l.b16 %v27
  %v82 = vunpack.c.l.b16 %v28
  %v83 = vunpack.c.l.b16 %v29
  %v84 = vunpack.c.l.b16 %v30
  %v85 = vunpack.c.l.b16 %v31
  %v86 = vunpack.c.l.b16 %v32
  %v87 = vunpack.c.l.b16 %v33
  %v88 = vunpack.c.l.b16 %v34
  %v89 = vunpack.c.l.b16 %v35
  %v90 = vunpack.c.l.b16 %v36
  %v91 = vunpack.c.l.b16 %v37
  %v92 = vunpack.c.l.b16 %v38
  %v93 = vunpack.c.l.b16 %v39
  %v94 = vunpack.c.l.b16 %v40
  %v95 = vunpack.c.l.b16 %v41
  %v96 = vunpack.c.l.b16 %v42
  %v97 = vunpack.c.l.b16 %v43
  %v98 = vpack.c.b16 %v81, %v80
  %v99 = vpack.c.b16 %v83, %v82
  %v100 = vpack.c.b16 %v85, %v84
  %v101 = vpack.c.b16 %v87, %v86
  %v102 = vpack.c.b16 %v89, %v88
  %v103 = vpack.c.b16 %v91, %v90
  %v104 = vpack.c.b16 %v93, %v92
  %v105 = vpack.c.b16 %v95, %v94
  %v106 = vpack.c.b16 %v97, %v96
  %vm116 = vcmask 130048
  %v118 = vsel %vm116, %v57, 0
  %v121 = vsel %vm116, %v59, 0
  %123 = vmatprep.subr.bf16.mxu0 0
  %124 = vmatpush1.bf16.msra.mxu0 %v98
  %125 = vmatprep.subr.bf16.mxu0 0
  %126 = vmatpush1.bf16.msra.mxu0 %v99
  %127 = vmatprep.subr.bf16.mxu0 0
  %128 = vmatpush1.bf16.msra.mxu0 %v100
  %129 = vmatprep.subr.bf16.mxu0 0
  %130 = vmatpush1.bf16.msra.mxu0 %v101
  %131 = vmatprep.subr.bf16.mxu0 0
  %132 = vmatpush1.bf16.msra.mxu0 %v102
  %133 = vmatprep.subr.bf16.mxu0 0
  %134 = vmatpush1.bf16.msra.mxu0 %v103
  %135 = vmatprep.subr.bf16.mxu0 0
  %136 = vmatpush1.bf16.msra.mxu0 %v104
  %137 = vmatprep.subr.bf16.mxu0 0
  %138 = vmatpush1.bf16.msra.mxu0 %v105
  %139 = vmatprep.subr.bf16.mxu0 0
  %140 = vmatpush1.bf16.msra.mxu0 %v106
  %141 = vmatprep.subr.bf16.mxu0 0
  %142 = vmatpush1.bf16.msra.mxu0 0
  %143 = vmatprep.subr.bf16.mxu0 0
  %144 = vmatpush1.bf16.msra.mxu0 0
  %145 = vmatprep.subr.bf16.mxu0 0
  %146 = vmatpush1.bf16.msra.mxu0 0
  %147 = vmatprep.subr.bf16.mxu0 0
  %148 = vmatpush1.bf16.msra.mxu0 0
  %149 = vmatprep.subr.bf16.mxu0 0
  %150 = vmatpush1.bf16.msra.mxu0 0
  %151 = vmatprep.subr.bf16.mxu0 0
  %152 = vmatpush1.bf16.msra.mxu0 0
  %153 = vmatprep.subr.bf16.mxu0 0
  %154 = vmatpush1.bf16.msra.mxu0 0
  %155 = vmatprep.mubr.bf16.mxu0 %v118
  %156 = vmatmul.mubr.bf16.gmra.mrb[0].mxu0 %v56
  %v157 = vpop.f32.mrb[0].mxu0
  %v158 = vadd.f32 0.0, %v157
  %v159 = vpop.f32.mrb[0].mxu0
  %v160 = vpop.f32.mrb[0].mxu0
  %v161 = vadd.f32 0.0, %v160
  %v162 = vpop.f32.mrb[0].mxu0
  %163 = vmatprep.mubr.bf16.mxu0 %v121
  %164 = vmatmul.mubr.bf16.gmra.mrb[0].mxu0 %v58
  %v165 = vpop.f32.mrb[0].mxu0
  %v166 = vadd.f32 0.0, %v165
  %v167 = vpop.f32.mrb[0].mxu0
  %v168 = vpop.f32.mrb[0].mxu0
  %v169 = vadd.f32 0.0, %v168
  %v170 = vpop.f32.mrb[0].mxu0
  %171 = vdwg.mxu0
  %v172 = vpack.c.bf16 %v161, %v158
  %v173 = vpack.c.bf16 %v169, %v166
  %v176 = vunpack.c.l.b16 %v172
  %v177 = vunpack.c.h.b16 %v172
  %v178 = vunpack.c.l.b16 %v173
  %v179 = vunpack.c.h.b16 %v173
  %v180 = vpack.c.b16 %v176, %v176
  %v181 = vpack.c.b16 %v177, %v177
  %v182 = vpack.c.b16 %v178, %v178
  %v183 = vpack.c.b16 %v179, %v179
  %vm188 = vcmask 257024
  %189 = vst.msk [vmem:[%s2] sm:$0xf] %vm188, %v180
  %190 = vst.msk [vmem:[%s2 + $0x4] sm:$0xf] %vm188, %v181
  %191 = vst.msk [vmem:[%s2 + $0x8] sm:$0xf] %vm188, %v182
  %192 = vst.msk [vmem:[%s2 + $0xc] sm:$0xf] %vm188, %v183
  %vm193 = vcmask 261120
  %v194 = vsel %vm193, %v158, 0.0
  %v195 = vsel %vm193, %v161, 0.0
  %v196 = vadd.f32 %v194, %v195
  %v197 = vsel %vm193, %v166, 0.0
  %v198 = vadd.f32 %v196, %v197
  %v199 = vsel %vm193, %v169, 0.0
  %v200 = vadd.f32 %v198, %v199
  %v201 = vrot.slane %v200, 4
  %v202 = vadd.f32 %v200, %v201
  %v203 = vrot.slane %v202, 2
  %v204 = vadd.f32 %v202, %v203
  %v205 = vrot.slane %v204, 1
  %v206 = vadd.f32 %v204, %v205
  %v207 = vrcp.pop 32.0
  %v208 = vmul.f32 %v206, %v207
  %v209 = vsub.f32 %v158, %v208
  %v210 = vsub.f32 %v161, %v208
  %v211 = vsub.f32 %v166, %v208
  %v212 = vsub.f32 %v169, %v208
  %v213 = vmul.f32 %v209, %v209
  %v214 = vmul.f32 %v210, %v210
  %v215 = vmul.f32 %v211, %v211
  %v216 = vmul.f32 %v212, %v212
  %v217 = vsel %vm193, %v213, 0.0
  %v218 = vsel %vm193, %v214, 0.0
  %v219 = vadd.f32 %v217, %v218
  %v220 = vsel %vm193, %v215, 0.0
  %v221 = vadd.f32 %v219, %v220
  %v222 = vsel %vm193, %v216, 0.0
  %v223 = vadd.f32 %v221, %v222
  %v224 = vrot.slane %v223, 4
  %v225 = vadd.f32 %v223, %v224
  %v226 = vrot.slane %v225, 2
  %v227 = vadd.f32 %v225, %v226
  %v228 = vrot.slane %v227, 1
  %v229 = vadd.f32 %v227, %v228
  %s230 = smul.u32 0, 32
  %s231 = scvt.s32.f32 %s230
  %s232 = sadd.f32 %s231, 32.0
  %v233 = vld [vmem:[%s3] sm:$0x1]
  %v234 = vsub.f32 %v208, %v233
  %v235 = vstv %s232
  %v236 = vrcp.pop %v235
  %s237 = vtos %v236
  %s238 = smul.f32 32.0, %s237
  %v239 = vstv %s238
  %v240 = vmul.f32 %v234, %v239
  %v241 = vadd.f32 %v233, %v240
  %vm242 = vcmask 253952
  %243 = vst.msk [vmem:[%s3] sm:$0x1] %vm242, %v241
  %v244 = vld [vmem:[%s4] sm:$0x1]
  %v245 = vadd.f32 %v244, %v229
  %v246 = vmul.f32 %v234, %v234
  %s247 = smul.f32 %s231, 32.0
  %v248 = vstv %s232
  %v249 = vrcp.pop %v248
  %s250 = vtos %v249
  %s251 = smul.f32 %s247, %s250
  %v252 = vstv %s251
  %v253 = vmul.f32 %v246, %v252
  %v254 = vadd.f32 %v245, %v253
  %255 = vst.msk [vmem:[%s4] sm:$0x1] %vm242, %v254
  // Predicated region
  $region14: #{decoder_forward.7} parent=0 // pred_check
    _
  $region15: #{decoder_forward.7} parent=0 // pred_check_branch
    %257 = sbr.rel (0) target = $region17
  $region16: #{decoder_forward.7} parent=0 // pred_region
    _
  $region17: #{decoder_forward.7} parent=0 // pred_fallthru
    _
  // Predicated region
  $region18: #{decoder_forward.7} parent=0 // pred_check
    _
  $region19: #{decoder_forward.7} parent=0 // pred_check_branch
    %259 = sbr.rel (0) target = $region21
  $region20: #{decoder_forward.7} parent=0 // pred_region
    _
  $region21: #{decoder_forward.7} parent=0 // pred_fallthru
    _
  // Predicated region
  $region22: #{decoder_forward.7} parent=0 // pred_check
    _
  $region23: #{decoder_forward.7} parent=0 // pred_check_branch
    %261 = sbr.rel (0) target = $region25
  $region24: #{decoder_forward.7} parent=0 // pred_region
    _
  $region25: #{decoder_forward.7} parent=0 // pred_fallthru
    _
  // Predicated region
  $region26: #{decoder_forward.7} parent=0 // pred_check
    _
  $region27: #{decoder_forward.7} parent=0 // pred_check_branch
    %263 = sbr.rel (0) target = $region29
  $region28: #{decoder_forward.7} parent=0 // pred_region
    _
  $region29: #{decoder_forward.7} parent=0 // pred_fallthru
    _
  // Predicated region
  $region30: #{decoder_forward.7} parent=0 // pred_check
    _
  $region31: #{decoder_forward.7} parent=0 // pred_check_branch
    %265 = sbr.rel (0) target = $region33
  $region32: #{decoder_forward.7} parent=0 // pred_region
    _
  $region33: #{decoder_forward.7} parent=0 // pred_fallthru
    _
  // Predicated region
  $region34: #{decoder_forward.7} parent=0 // pred_check
    _
  $region35: #{decoder_forward.7} parent=0 // pred_check_branch
    %267 = sbr.rel (0) target = $region37
  $region36: #{decoder_forward.7} parent=0 // pred_region
    _
  $region37: #{decoder_forward.7} parent=0 // pred_fallthru
    _

// kernel: decoder_forward.8
$region0: #{decoder_forward.8}
  #allocation0 [shape = 'u32[]', space=smem, size = 0x4, offset = 0x4, fixed_abs, tag = 'smem constant byte address 0x4 - core index']
  #allocation1 [shape = 'u32[144,128]{1,0:T(1,128)}', space=vmem, size = 0x12000, scoped, tag = 'internal scratch']
  %s0 = inlined_call_operand.vmem [shape: bf16[32,32], index: 0, kind: input, shape index: {}]
  %s1 = inlined_call_operand.vmem [shape: f32[1,32], index: 1, kind: input, shape index: {}]
  %s2 = inlined_call_operand.vmem [shape: f32[1,32], index: 2, kind: input, shape index: {}]
  %s3 = inlined_call_operand.vmem [shape: bf16[32,32], index: 3, kind: output, shape index: {}]
  %s4 = sld [smem:[#allocation0]]
  $region22: #{decoder_forward.8} parent=0
    _
  %s6 = ssub.s32 1, %s4
  %s7 = scalar_select 0, %s6, %s4
  // Predicated region
  $region2: #{decoder_forward.8} parent=0 // pred_check
    _
  $region3: #{decoder_forward.8} parent=0 // pred_check_branch
    %9 = sbr.rel (0) target = $region5
  $region4: #{decoder_forward.8} parent=0 // pred_region
    _
  $region5: #{decoder_forward.8} parent=0 // pred_fallthru
    _
  // Predicated region
  $region6: #{decoder_forward.8} parent=0 // pred_check
    _
  $region7: #{decoder_forward.8} parent=0 // pred_check_branch
    %11 = sbr.rel (0) target = $region9
  $region8: #{decoder_forward.8} parent=0 // pred_region
    _
  $region9: #{decoder_forward.8} parent=0 // pred_fallthru
    _
  // Predicated region
  $region10: #{decoder_forward.8} parent=0 // pred_check
    _
  $region11: #{decoder_forward.8} parent=0 // pred_check_branch
    %13 = sbr.rel (0) target = $region13
  $region12: #{decoder_forward.8} parent=0 // pred_region
    _
  $region13: #{decoder_forward.8} parent=0 // pred_fallthru
    _
  %v14 = vld [vmem:[%s0] sm:$0xf]
  %v15 = vld [vmem:[%s0 + $0x4] sm:$0xf]
  %v16 = vld [vmem:[%s0 + $0x8] sm:$0xf]
  %v17 = vld [vmem:[%s0 + $0xc] sm:$0xf]
  %v18 = vunpack.c.l.bf16 %v14
  %v19 = vunpack.c.l.bf16 %v15
  %v20 = vunpack.c.l.bf16 %v16
  %v21 = vunpack.c.l.bf16 %v17
  %v22 = vld [vmem:[%s1] sm:$0x1]
  %v24 = vlaneseq
  %v25 = vshrl.u32 %v24, 7
  %v26 = vsub.s32 0, %v25
  %v27 = vrot.slane %v22, %v26
  %v29 = vmul.f32 %v18, %v27
  %v30 = vmul.f32 %v19, %v27
  %v31 = vmul.f32 %v20, %v27
  %v32 = vmul.f32 %v21, %v27
  %v33 = vld [vmem:[%s2] sm:$0x1]
  %v35 = vlaneseq
  %v36 = vshrl.u32 %v35, 7
  %v37 = vsub.s32 0, %v36
  %v38 = vrot.slane %v33, %v37
  %v40 = vadd.f32 %v29, %v38
  %v41 = vadd.f32 %v30, %v38
  %v42 = vadd.f32 %v31, %v38
  %v43 = vadd.f32 %v32, %v38
  %v44 = vmax.f32 %v40, 0.0
  %v45 = vmax.f32 %v41, 0.0
  %v46 = vmax.f32 %v42, 0.0
  %v47 = vmax.f32 %v43, 0.0
  %v48 = vpack.c.bf16 %v45, %v44
  %v49 = vpack.c.bf16 %v47, %v46
  %v52 = vunpack.c.l.b16 %v48
  %v53 = vunpack.c.h.b16 %v48
  %v54 = vunpack.c.l.b16 %v49
  %v55 = vunpack.c.h.b16 %v49
  %v56 = vpack.c.b16 %v52, %v52
  %v57 = vpack.c.b16 %v53, %v53
  %v58 = vpack.c.b16 %v54, %v54
  %v59 = vpack.c.b16 %v55, %v55
  %vm64 = vcmask 257024
  %65 = vst.msk [vmem:[%s3] sm:$0xf] %vm64, %v56
  %66 = vst.msk [vmem:[%s3 + $0x4] sm:$0xf] %vm64, %v57
  %67 = vst.msk [vmem:[%s3 + $0x8] sm:$0xf] %vm64, %v58
  %68 = vst.msk [vmem:[%s3 + $0xc] sm:$0xf] %vm64, %v59
  // Predicated region
  $region14: #{decoder_forward.8} parent=0 // pred_check
    _
  $region15: #{decoder_forward.8} parent=0 // pred_check_branch
    %70 = sbr.rel (0) target = $region17
  $region16: #{decoder_forward.8} parent=0 // pred_region
    _
  $region17: #{decoder_forward.8} parent=0 // pred_fallthru
    _
  // Predicated region
  $region18: #{decoder_forward.8} parent=0 // pred_check
    _
  $region19: #{decoder_forward.8} parent=0 // pred_check_branch
    %72 = sbr.rel (0) target = $region21
  $region20: #{decoder_forward.8} parent=0 // pred_region
    _
  $region21: #{decoder_forward.8} parent=0 // pred_fallthru
    _

// kernel: tile.33
$region0: #{tile.33}
  #allocation0 [shape = 's32[1]{0}', space=sflag, size = 0x4, scoped, tag = 'scoped memory for tile.33']
  %s0 = inlined_call_operand.vmem [shape: f32[4], index: 0, kind: input, shape index: {}]
  %s1 = inlined_call_operand.vmem [shape: f32[4,4], index: 1, kind: output, shape index: {}]
  // Predicated region
  $region2: #{tile.33} parent=0 // pred_check
    _
  $region3: #{tile.33} parent=0 // pred_check_branch
    %3 = sbr.rel (0) target = $region5
  $region4: #{tile.33} parent=0 // pred_region
    _
  $region5: #{tile.33} parent=0 // pred_fallthru
    _
  %v4 = vld [vmem:[%s0] ss:$0 sm:$0xff]
  %5 = vst [vmem:[%s1] sm:$0xf] %v4

// kernel: tile.34
$region0: #{tile.34}
  %s0 = inlined_call_operand.vmem [shape: f32[4,4], index: 0, kind: input, shape index: {}]
  %s1 = inlined_call_operand.vmem [shape: f32[1,16], index: 1, kind: output, shape index: {}]
  $region1: #{tile.34} parent=0
    #allocation0 [shape = 'u8[4096]{0}', space=vmem, size = 0x1000, scoped, tag = 'scoped mem for output reshape']
    #allocation1 [shape = 'u8[4096]{0}', space=vmem, size = 0x1000, scoped, tag = 'scoped mem for input reshape']
    %s3 = sshllo.u32 0, 4
    %v4 = vld [vmem:[%s0] sm:%s3]
    %5 = vst [vmem:[#allocation1] sm:%s3] %v4
    %v6 = vld [vmem:[#allocation1] sm:$0x1]
    %vm7 = vcmask 31744
    %8 = vst.msk [vmem:[#allocation0] sm:$0x1] %vm7, %v6
    %s9 = scalar_lea.vmem [#allocation1], 3
    %v10 = vld [vmem:[%s9] sm:$0x1]
    %11 = vrot.lane.b32.xlu0 %v10, 12
    %v12 = vpop.permute.xlu0 %11
    %vm13 = vcmask 130144
    %14 = vst.msk [vmem:[#allocation0] sm:$0x1] %vm13, %v12
    %s15 = scalar_lea.vmem [#allocation1], 2
    %v16 = vld [vmem:[%s15] sm:$0x1]
    %17 = vrot.lane.b32.xlu0 %v16, 8
    %v18 = vpop.permute.xlu0 %17
    %vm19 = vcmask 97344
    %20 = vst.msk [vmem:[#allocation0] sm:$0x1] %vm19, %v18
    %s21 = scalar_lea.vmem [#allocation1], 1
    %v22 = vld [vmem:[%s21] sm:$0x1]
    %23 = vrot.lane.b32.xlu0 %v22, 4
    %v24 = vpop.permute.xlu0 %23
    %vm25 = vcmask 64544
    %26 = vst.msk [vmem:[#allocation0] sm:$0x1] %vm25, %v24
    %s28 = sshllo.u32 0, 1
    %v30 = vld [vmem:[#allocation0] sm:%s28]
    %s31 = sshllo.u32 0, 1
    %32 = vst [vmem:[%s1] sm:%s31] %v30

// kernel: decoder_forward.9
$region0: #{decoder_forward.9}
  #allocation0 [shape = 'u32[]', space=smem, size = 0x4, offset = 0x4, fixed_abs, tag = 'smem constant byte address 0x4 - core index']
  #allocation1 [shape = 'u32[144,128]{1,0:T(1,128)}', space=vmem, size = 0x12000, scoped, tag = 'internal scratch']
  %s0 = inlined_call_operand.vmem [shape: bf16[128,72], index: 0, kind: input, shape index: {}]
  %s1 = inlined_call_operand.vmem [shape: bf16[72,16], index: 1, kind: input, shape index: {}]
  %s2 = inlined_call_operand.vmem [shape: bf16[128,16], index: 2, kind: output, shape index: {0}]
  %s3 = inlined_call_operand.vmem [shape: f32[1,16], index: 3, kind: output, shape index: {1}]
  %s4 = inlined_call_operand.vmem [shape: f32[1,16], index: 4, kind: output, shape index: {2}]
  %5 = xla_tuple %s2, %s3, %s4
  %s6 = sld [smem:[#allocation0]]
  $region38: #{decoder_forward.9} parent=0
    _
  %s8 = ssub.s32 1, %s6
  %s9 = scalar_select 0, %s8, %s6
  // Predicated region
  $region2: #{decoder_forward.9} parent=0 // pred_check
    _
  $region3: #{decoder_forward.9} parent=0 // pred_check_branch
    %11 = sbr.rel (0) target = $region5
  $region4: #{decoder_forward.9} parent=0 // pred_region
    _
  $region5: #{decoder_forward.9} parent=0 // pred_fallthru
    _
  // Predicated region
  $region6: #{decoder_forward.9} parent=0 // pred_check
    _
  $region7: #{decoder_forward.9} parent=0 // pred_check_branch
    %13 = sbr.rel (0) target = $region9
  $region8: #{decoder_forward.9} parent=0 // pred_region
    _
  $region9: #{decoder_forward.9} parent=0 // pred_fallthru
    _
  %p15 = scmp.eq.s32.totalorder 0, 0
  // Predicated region
  $region10: #{decoder_forward.9} parent=0 // pred_check
    %p16 = pneg %p15
  $region11: #{decoder_forward.9} parent=0 // pred_check_branch
    %18 = sbr.rel (%p16) target = $region13
  $region12: #{decoder_forward.9} parent=0 // pred_region
    %vm19 = vcmask 122880
    %20 = vst.msk [vmem:[%s3] sm:$0x1] %vm19, 0.0
    %21 = vst.msk [vmem:[%s4] sm:$0x1] %vm19, 0.0
  $region13: #{decoder_forward.9} parent=0 // pred_fallthru
    _
  %v22 = vld [vmem:[%s0] sm:$0xf]
  %v23 = vld [vmem:[%s0 + $0x4] sm:$0xf]
  %v24 = vld [vmem:[%s0 + $0x8] sm:$0xf]
  %v25 = vld [vmem:[%s0 + $0xc] sm:$0xf]
  %v26 = vld [vmem:[%s0 + $0x10] sm:$0xf]
  %v27 = vld [vmem:[%s0 + $0x14] sm:$0xf]
  %v28 = vld [vmem:[%s0 + $0x18] sm:$0xf]
  %v29 = vld [vmem:[%s0 + $0x1c] sm:$0xf]
  %v30 = vld [vmem:[%s0 + $0x20] sm:$0xf]
  %v31 = vld [vmem:[%s0 + $0x24] sm:$0xf]
  %v32 = vld [vmem:[%s0 + $0x28] sm:$0xf]
  %v33 = vld [vmem:[%s0 + $0x2c] sm:$0xf]
  %v34 = vld [vmem:[%s0 + $0x30] sm:$0xf]
  %v35 = vld [vmem:[%s0 + $0x34] sm:$0xf]
  %v36 = vld [vmem:[%s0 + $0x38] sm:$0xf]
  %v37 = vld [vmem:[%s0 + $0x3c] sm:$0xf]
  %v38 = vld [vmem:[%s1] sm:$0xf]
  %v39 = vld [vmem:[%s1 + $0x4] sm:$0xf]
  %v40 = vld [vmem:[%s1 + $0x8] sm:$0xf]
  %v41 = vld [vmem:[%s1 + $0xc] sm:$0xf]
  %v42 = vld [vmem:[%s1 + $0x10] sm:$0xf]
  %v43 = vld [vmem:[%s1 + $0x14] sm:$0xf]
  %v44 = vld [vmem:[%s1 + $0x18] sm:$0xf]
  %v45 = vld [vmem:[%s1 + $0x1c] sm:$0xf]
  %v46 = vld [vmem:[%s1 + $0x20] sm:$0xf]
  %v63 = vunpack.c.l.b16 %v22
  %v64 = vunpack.c.l.b16 %v23
  %v65 = vunpack.c.l.b16 %v24
  %v66 = vunpack.c.l.b16 %v25
  %v67 = vunpack.c.l.b16 %v26
  %v68 = vunpack.c.l.b16 %v27
  %v69 = vunpack.c.l.b16 %v28
  %v70 = vunpack.c.l.b16 %v29
  %v71 = vunpack.c.l.b16 %v30
  %v72 = vunpack.c.l.b16 %v31
  %v73 = vunpack.c.l.b16 %v32
  %v74 = vunpack.c.l.b16 %v33
  %v75 = vunpack.c.l.b16 %v34
  %v76 = vunpack.c.l.b16 %v35
  %v77 = vunpack.c.l.b16 %v36
  %v78 = vunpack.c.l.b16 %v37
  %v79 = vpack.c.b16 %v64, %v63
  %v80 = vpack.c.b16 %v66, %v65
  %v81 = vpack.c.b16 %v68, %v67
  %v82 = vpack.c.b16 %v70, %v69
  %v83 = vpack.c.b16 %v72, %v71
  %v84 = vpack.c.b16 %v74, %v73
  %v85 = vpack.c.b16 %v76, %v75
  %v86 = vpack.c.b16 %v78, %v77
  %v96 = vunpack.c.l.b16 %v38
  %v97 = vunpack.c.l.b16 %v39
  %v98 = vunpack.c.l.b16 %v40
  %v99 = vunpack.c.l.b16 %v41
  %v100 = vunpack.c.l.b16 %v42
  %v101 = vunpack.c.l.b16 %v43
  %v102 = vunpack.c.l.b16 %v44
  %v103 = vunpack.c.l.b16 %v45
  %v104 = vunpack.c.l.b16 %v46
  %v105 = vpack.c.b16 %v97, %v96
  %v106 = vpack.c.b16 %v99, %v98
  %v107 = vpack.c.b16 %v101, %v100
  %v108 = vpack.c.b16 %v103, %v102
  %v109 = vpack.c.b16 %v104, %v104
  %vm114 = vcmask 588800
  %v116 = vsel %vm114, %v79, 0
  %v119 = vsel %vm114, %v80, 0
  %v122 = vsel %vm114, %v81, 0
  %v125 = vsel %vm114, %v82, 0
  %v128 = vsel %vm114, %v83, 0
  %v131 = vsel %vm114, %v84, 0
  %v134 = vsel %vm114, %v85, 0
  %v137 = vsel %vm114, %v86, 0
  %vm139 = vcmask 1043456
  %v141 = vsel %vm139, %v109, 0
  %143 = vmatprep.subr.bf16.mxu0 0
  %144 = vmatpush1.bf16.msra.mxu0 %v105
  %145 = vmatprep.subr.bf16.mxu0 0
  %146 = vmatpush1.bf16.msra.mxu0 %v106
  %147 = vmatprep.subr.bf16.mxu0 0
  %148 = vmatpush1.bf16.msra.mxu0 %v107
  %149 = vmatprep.subr.bf16.mxu0 0
  %150 = vmatpush1.bf16.msra.mxu0 %v108
  %151 = vmatprep.subr.bf16.mxu0 0
  %152 = vmatpush1.bf16.msra.mxu0 %v141
  %153 = vmatprep.subr.bf16.mxu0 0
  %154 = vmatpush1.bf16.msra.mxu0 0
  %155 = vmatprep.subr.bf16.mxu0 0
  %156 = vmatpush1.bf16.msra.mxu0 0
  %157 = vmatprep.subr.bf16.mxu0 0
  %158 = vmatpush1.bf16.msra.mxu0 0
  %159 = vmatprep.subr.bf16.mxu0 0
  %160 = vmatpush1.bf16.msra.mxu0 0
  %161 = vmatprep.subr.bf16.mxu0 0
  %162 = vmatpush1.bf16.msra.mxu0 0
  %163 = vmatprep.subr.bf16.mxu0 0
  %164 = vmatpush1.bf16.msra.mxu0 0
  %165 = vmatprep.subr.bf16.mxu0 0
  %166 = vmatpush1.bf16.msra.mxu0 0
  %167 = vmatprep.subr.bf16.mxu0 0
  %168 = vmatpush1.bf16.msra.mxu0 0
  %169 = vmatprep.subr.bf16.mxu0 0
  %170 = vmatpush1.bf16.msra.mxu0 0
  %171 = vmatprep.subr.bf16.mxu0 0
  %172 = vmatpush1.bf16.msra.mxu0 0
  %173 = vmatprep.subr.bf16.mxu0 0
  %174 = vmatpush1.bf16.msra.mxu0 0
  %175 = vmatprep.mubr.bf16.mxu0 0
  %176 = vmatmul.mubr.bf16.gmra.mrb[0].mxu0 %v116
  %v177 = vpop.f32.mrb[0].mxu0
  %v178 = vadd.f32 0.0, %v177
  %v179 = vpop.f32.mrb[0].mxu0
  %v180 = vpop.f32.mrb[0].mxu0
  %v181 = vadd.f32 0.0, %v180
  %v182 = vpop.f32.mrb[0].mxu0
  %183 = vmatprep.mubr.bf16.mxu0 0
  %184 = vmatmul.mubr.bf16.gmra.mrb[0].mxu0 %v119
  %v185 = vpop.f32.mrb[0].mxu0
  %v186 = vadd.f32 0.0, %v185
  %v187 = vpop.f32.mrb[0].mxu0
  %v188 = vpop.f32.mrb[0].mxu0
  %v189 = vadd.f32 0.0, %v188
  %v190 = vpop.f32.mrb[0].mxu0
  %191 = vmatprep.mubr.bf16.mxu0 0
  %192 = vmatmul.mubr.bf16.gmra.mrb[0].mxu0 %v122
  %v193 = vpop.f32.mrb[0].mxu0
  %v194 = vadd.f32 0.0, %v193
  %v195 = vpop.f32.mrb[0].mxu0
  %v196 = vpop.f32.mrb[0].mxu0
  %v197 = vadd.f32 0.0, %v196
  %v198 = vpop.f32.mrb[0].mxu0
  %199 = vmatprep.mubr.bf16.mxu0 0
  %200 = vmatmul.mubr.bf16.gmra.mrb[0].mxu0 %v125
  %v201 = vpop.f32.mrb[0].mxu0
  %v202 = vadd.f32 0.0, %v201
  %v203 = vpop.f32.mrb[0].mxu0
  %v204 = vpop.f32.mrb[0].mxu0
  %v205 = vadd.f32 0.0, %v204
  %v206 = vpop.f32.mrb[0].mxu0
  %207 = vmatprep.mubr.bf16.mxu0 0
  %208 = vmatmul.mubr.bf16.gmra.mrb[0].mxu0 %v128
  %v209 = vpop.f32.mrb[0].mxu0
  %v210 = vadd.f32 0.0, %v209
  %v211 = vpop.f32.mrb[0].mxu0
  %v212 = vpop.f32.mrb[0].mxu0
  %v213 = vadd.f32 0.0, %v212
  %v214 = vpop.f32.mrb[0].mxu0
  %215 = vmatprep.mubr.bf16.mxu0 0
  %216 = vmatmul.mubr.bf16.gmra.mrb[0].mxu0 %v131
  %v217 = vpop.f32.mrb[0].mxu0
  %v218 = vadd.f32 0.0, %v217
  %v219 = vpop.f32.mrb[0].mxu0
  %v220 = vpop.f32.mrb[0].mxu0
  %v221 = vadd.f32 0.0, %v220
  %v222 = vpop.f32.mrb[0].mxu0
  %223 = vmatprep.mubr.bf16.mxu0 0
  %224 = vmatmul.mubr.bf16.gmra.mrb[0].mxu0 %v134
  %v225 = vpop.f32.mrb[0].mxu0
  %v226 = vadd.f32 0.0, %v225
  %v227 = vpop.f32.mrb[0].mxu0
  %v228 = vpop.f32.mrb[0].mxu0
  %v229 = vadd.f32 0.0, %v228
  %v230 = vpop.f32.mrb[0].mxu0
  %231 = vmatprep.mubr.bf16.mxu0 0
  %232 = vmatmul.mubr.bf16.gmra.mrb[0].mxu0 %v137
  %v233 = vpop.f32.mrb[0].mxu0
  %v234 = vadd.f32 0.0, %v233
  %v235 = vpop.f32.mrb[0].mxu0
  %v236 = vpop.f32.mrb[0].mxu0
  %v237 = vadd.f32 0.0, %v236
  %v238 = vpop.f32.mrb[0].mxu0
  %239 = vdwg.mxu0
  %v240 = vpack.c.bf16 %v181, %v178
  %v241 = vpack.c.bf16 %v189, %v186
  %v242 = vpack.c.bf16 %v197, %v194
  %v243 = vpack.c.bf16 %v205, %v202
  %v244 = vpack.c.bf16 %v213, %v210
  %v245 = vpack.c.bf16 %v221, %v218
  %v246 = vpack.c.bf16 %v229, %v226
  %v247 = vpack.c.bf16 %v237, %v234
  %v256 = vunpack.c.l.b16 %v240
  %v257 = vunpack.c.h.b16 %v240
  %v258 = vunpack.c.l.b16 %v241
  %v259 = vunpack.c.h.b16 %v241
  %v260 = vunpack.c.l.b16 %v242
  %v261 = vunpack.c.h.b16 %v242
  %v262 = vunpack.c.l.b16 %v243
  %v263 = vunpack.c.h.b16 %v243
  %v264 = vunpack.c.l.b16 %v244
  %v265 = vunpack.c.h.b16 %v244
  %v266 = vunpack.c.l.b16 %v245
  %v267 = vunpack.c.h.b16 %v245
  %v268 = vunpack.c.l.b16 %v246
  %v269 = vunpack.c.h.b16 %v246
  %v270 = vunpack.c.l.b16 %v247
  %v271 = vunpack.c.h.b16 %v247
  %v272 = vpack.c.b16 %v256, %v256
  %v273 = vpack.c.b16 %v257, %v257
  %v274 = vpack.c.b16 %v258, %v258
  %v275 = vpack.c.b16 %v259, %v259
  %v276 = vpack.c.b16 %v260, %v260
  %v277 = vpack.c.b16 %v261, %v261
  %v278 = vpack.c.b16 %v262, %v262
  %v279 = vpack.c.b16 %v263, %v263
  %v280 = vpack.c.b16 %v264, %v264
  %v281 = vpack.c.b16 %v265, %v265
  %v282 = vpack.c.b16 %v266, %v266
  %v283 = vpack.c.b16 %v267, %v267
  %v284 = vpack.c.b16 %v268, %v268
  %v285 = vpack.c.b16 %v269, %v269
  %v286 = vpack.c.b16 %v270, %v270
  %v287 = vpack.c.b16 %v271, %v271
  %vm304 = vcmask 125952
  %305 = vst.msk [vmem:[%s2] sm:$0xf] %vm304, %v272
  %306 = vst.msk [vmem:[%s2 + $0x4] sm:$0xf] %vm304, %v273
  %307 = vst.msk [vmem:[%s2 + $0x8] sm:$0xf] %vm304, %v274
  %308 = vst.msk [vmem:[%s2 + $0xc] sm:$0xf] %vm304, %v275
  %309 = vst.msk [vmem:[%s2 + $0x10] sm:$0xf] %vm304, %v276
  %310 = vst.msk [vmem:[%s2 + $0x14] sm:$0xf] %vm304, %v277
  %311 = vst.msk [vmem:[%s2 + $0x18] sm:$0xf] %vm304, %v278
  %312 = vst.msk [vmem:[%s2 + $0x1c] sm:$0xf] %vm304, %v279
  %313 = vst.msk [vmem:[%s2 + $0x20] sm:$0xf] %vm304, %v280
  %314 = vst.msk [vmem:[%s2 + $0x24] sm:$0xf] %vm304, %v281
  %315 = vst.msk [vmem:[%s2 + $0x28] sm:$0xf] %vm304, %v282
  %316 = vst.msk [vmem:[%s2 + $0x2c] sm:$0xf] %vm304, %v283
  %317 = vst.msk [vmem:[%s2 + $0x30] sm:$0xf] %vm304, %v284
  %318 = vst.msk [vmem:[%s2 + $0x34] sm:$0xf] %vm304, %v285
  %319 = vst.msk [vmem:[%s2 + $0x38] sm:$0xf] %vm304, %v286
  %320 = vst.msk [vmem:[%s2 + $0x3c] sm:$0xf] %vm304, %v287
  %vm321 = vcmask 130048
  %v322 = vsel %vm321, %v178, 0.0
  %v323 = vsel %vm321, %v181, 0.0
  %v324 = vadd.f32 %v322, %v323
  %v325 = vsel %vm321, %v186, 0.0
  %v326 = vadd.f32 %v324, %v325
  %v327 = vsel %vm321, %v189, 0.0
  %v328 = vadd.f32 %v326, %v327
  %v329 = vsel %vm321, %v194, 0.0
  %v330 = vadd.f32 %v328, %v329
  %v331 = vsel %vm321, %v197, 0.0
  %v332 = vadd.f32 %v330, %v331
  %v333 = vsel %vm321, %v202, 0.0
  %v334 = vadd.f32 %v332, %v333
  %v335 = vsel %vm321, %v205, 0.0
  %v336 = vadd.f32 %v334, %v335
  %v337 = vsel %vm321, %v210, 0.0
  %v338 = vadd.f32 %v336, %v337
  %v339 = vsel %vm321, %v213, 0.0
  %v340 = vadd.f32 %v338, %v339
  %v341 = vsel %vm321, %v218, 0.0
  %v342 = vadd.f32 %v340, %v341
  %v343 = vsel %vm321, %v221, 0.0
  %v344 = vadd.f32 %v342, %v343
  %v345 = vsel %vm321, %v226, 0.0
  %v346 = vadd.f32 %v344, %v345
  %v347 = vsel %vm321, %v229, 0.0
  %v348 = vadd.f32 %v346, %v347
  %v349 = vsel %vm321, %v234, 0.0
  %v350 = vadd.f32 %v348, %v349
  %v351 = vsel %vm321, %v237, 0.0
  %v352 = vadd.f32 %v350, %v351
  %v353 = vrot.slane %v352, 4
  %v354 = vadd.f32 %v352, %v353
  %v355 = vrot.slane %v354, 2
  %v356 = vadd.f32 %v354, %v355
  %v357 = vrot.slane %v356, 1
  %v358 = vadd.f32 %v356, %v357
  %v359 = vrcp.pop 128.0
  %v360 = vmul.f32 %v358, %v359
  %v361 = vsub.f32 %v178, %v360
  %v362 = vsub.f32 %v181, %v360
  %v363 = vsub.f32 %v186, %v360
  %v364 = vsub.f32 %v189, %v360
  %v365 = vsub.f32 %v194, %v360
  %v366 = vsub.f32 %v197, %v360
  %v367 = vsub.f32 %v202, %v360
  %v368 = vsub.f32 %v205, %v360
  %v369 = vsub.f32 %v210, %v360
  %v370 = vsub.f32 %v213, %v360
  %v371 = vsub.f32 %v218, %v360
  %v372 = vsub.f32 %v221, %v360
  %v373 = vsub.f32 %v226, %v360
  %v374 = vsub.f32 %v229, %v360
  %v375 = vsub.f32 %v234, %v360
  %v376 = vsub.f32 %v237, %v360
  %v377 = vmul.f32 %v361, %v361
  %v378 = vmul.f32 %v362, %v362
  %v379 = vmul.f32 %v363, %v363
  %v380 = vmul.f32 %v364, %v364
  %v381 = vmul.f32 %v365, %v365
  %v382 = vmul.f32 %v366, %v366
  %v383 = vmul.f32 %v367, %v367
  %v384 = vmul.f32 %v368, %v368
  %v385 = vmul.f32 %v369, %v369
  %v386 = vmul.f32 %v370, %v370
  %v387 = vmul.f32 %v371, %v371
  %v388 = vmul.f32 %v372, %v372
  %v389 = vmul.f32 %v373, %v373
  %v390 = vmul.f32 %v374, %v374
  %v391 = vmul.f32 %v375, %v375
  %v392 = vmul.f32 %v376, %v376
  %v393 = vsel %vm321, %v377, 0.0
  %v394 = vsel %vm321, %v378, 0.0
  %v395 = vadd.f32 %v393, %v394
  %v396 = vsel %vm321, %v379, 0.0
  %v397 = vadd.f32 %v395, %v396
  %v398 = vsel %vm321, %v380, 0.0
  %v399 = vadd.f32 %v397, %v398
  %v400 = vsel %vm321, %v381, 0.0
  %v401 = vadd.f32 %v399, %v400
  %v402 = vsel %vm321, %v382, 0.0
  %v403 = vadd.f32 %v401, %v402
  %v404 = vsel %vm321, %v383, 0.0
  %v405 = vadd.f32 %v403, %v404
  %v406 = vsel %vm321, %v384, 0.0
  %v407 = vadd.f32 %v405, %v406
  %v408 = vsel %vm321, %v385, 0.0
  %v409 = vadd.f32 %v407, %v408
  %v410 = vsel %vm321, %v386, 0.0
  %v411 = vadd.f32 %v409, %v410
  %v412 = vsel %vm321, %v387, 0.0
  %v413 = vadd.f32 %v411, %v412
  %v414 = vsel %vm321, %v388, 0.0
  %v415 = vadd.f32 %v413, %v414
  %v416 = vsel %vm321, %v389, 0.0
  %v417 = vadd.f32 %v415, %v416
  %v418 = vsel %vm321, %v390, 0.0
  %v419 = vadd.f32 %v417, %v418
  %v420 = vsel %vm321, %v391, 0.0
  %v421 = vadd.f32 %v419, %v420
  %v422 = vsel %vm321, %v392, 0.0
  %v423 = vadd.f32 %v421, %v422
  %v424 = vrot.slane %v423, 4
  %v425 = vadd.f32 %v423, %v424
  %v426 = vrot.slane %v425, 2
  %v427 = vadd.f32 %v425, %v426
  %v428 = vrot.slane %v427, 1
  %v429 = vadd.f32 %v427, %v428
  %s430 = smul.u32 0, 128
  %s431 = scvt.s32.f32 %s430
  %s432 = sadd.f32 %s431, 128.0
  %v433 = vld [vmem:[%s3] sm:$0x1]
  %v434 = vsub.f32 %v360, %v433
  %v435 = vstv %s432
  %v436 = vrcp.pop %v435
  %s437 = vtos %v436
  %s438 = smul.f32 128.0, %s437
  %v439 = vstv %s438
  %v440 = vmul.f32 %v434, %v439
  %v441 = vadd.f32 %v433, %v440
  %vm442 = vcmask 122880
  %443 = vst.msk [vmem:[%s3] sm:$0x1] %vm442, %v441
  %v444 = vld [vmem:[%s4] sm:$0x1]
  %v445 = vadd.f32 %v444, %v429
  %v446 = vmul.f32 %v434, %v434
  %s447 = smul.f32 %s431, 128.0
  %v448 = vstv %s432
  %v449 = vrcp.pop %v448
  %s450 = vtos %v449
  %s451 = smul.f32 %s447, %s450
  %v452 = vstv %s451
  %v453 = vmul.f32 %v446, %v452
  %v454 = vadd.f32 %v445, %v453
  %455 = vst.msk [vmem:[%s4] sm:$0x1] %vm442, %v454
  // Predicated region
  $region14: #{decoder_forward.9} parent=0 // pred_check
    _
  $region15: #{decoder_forward.9} parent=0 // pred_check_branch
    %457 = sbr.rel (0) target = $region17
  $region16: #{decoder_forward.9} parent=0 // pred_region
    _
  $region17: #{decoder_forward.9} parent=0 // pred_fallthru
    _
  // Predicated region
  $region18: #{decoder_forward.9} parent=0 // pred_check
    _
  $region19: #{decoder_forward.9} parent=0 // pred_check_branch
    %459 = sbr.rel (0) target = $region21
  $region20: #{decoder_forward.9} parent=0 // pred_region
    _
  $region21: #{decoder_forward.9} parent=0 // pred_fallthru
    _
  // Predicated region
  $region22: #{decoder_forward.9} parent=0 // pred_check
    _
  $region23: #{decoder_forward.9} parent=0 // pred_check_branch
    %461 = sbr.rel (0) target = $region25
  $region24: #{decoder_forward.9} parent=0 // pred_region
    _
  $region25: #{decoder_forward.9} parent=0 // pred_fallthru
    _
  // Predicated region
  $region26: #{decoder_forward.9} parent=0 // pred_check
    _
  $region27: #{decoder_forward.9} parent=0 // pred_check_branch
    %463 = sbr.rel (0) target = $region29
  $region28: #{decoder_forward.9} parent=0 // pred_region
    _
  $region29: #{decoder_forward.9} parent=0 // pred_fallthru
    _
  // Predicated region
  $region30: #{decoder_forward.9} parent=0 // pred_check
    _
  $region31: #{decoder_forward.9} parent=0 // pred_check_branch
    %465 = sbr.rel (0) target = $region33
  $region32: #{decoder_forward.9} parent=0 // pred_region
    _
  $region33: #{decoder_forward.9} parent=0 // pred_fallthru
    _
  // Predicated region
  $region34: #{decoder_forward.9} parent=0 // pred_check
    _
  $region35: #{decoder_forward.9} parent=0 // pred_check_branch
    %467 = sbr.rel (0) target = $region37
  $region36: #{decoder_forward.9} parent=0 // pred_region
    _
  $region37: #{decoder_forward.9} parent=0 // pred_fallthru
    _

// kernel: decoder_forward.10
$region0: #{decoder_forward.10}
  #allocation0 [shape = 'u32[]', space=smem, size = 0x4, offset = 0x4, fixed_abs, tag = 'smem constant byte address 0x4 - core index']
  #allocation1 [shape = 'u32[144,128]{1,0:T(1,128)}', space=vmem, size = 0x12000, scoped, tag = 'internal scratch']
  %s0 = inlined_call_operand.vmem [shape: bf16[128,16], index: 0, kind: input, shape index: {}]
  %s1 = inlined_call_operand.vmem [shape: f32[1,16], index: 1, kind: input, shape index: {}]
  %s2 = inlined_call_operand.vmem [shape: f32[1,16], index: 2, kind: input, shape index: {}]
  %s3 = inlined_call_operand.vmem [shape: bf16[128,16], index: 3, kind: output, shape index: {}]
  %s4 = sld [smem:[#allocation0]]
  $region22: #{decoder_forward.10} parent=0
    _
  %s6 = ssub.s32 1, %s4
  %s7 = scalar_select 0, %s6, %s4
  // Predicated region
  $region2: #{decoder_forward.10} parent=0 // pred_check
    _
  $region3: #{decoder_forward.10} parent=0 // pred_check_branch
    %9 = sbr.rel (0) target = $region5
  $region4: #{decoder_forward.10} parent=0 // pred_region
    _
  $region5: #{decoder_forward.10} parent=0 // pred_fallthru
    _
  // Predicated region
  $region6: #{decoder_forward.10} parent=0 // pred_check
    _
  $region7: #{decoder_forward.10} parent=0 // pred_check_branch
    %11 = sbr.rel (0) target = $region9
  $region8: #{decoder_forward.10} parent=0 // pred_region
    _
  $region9: #{decoder_forward.10} parent=0 // pred_fallthru
    _
  // Predicated region
  $region10: #{decoder_forward.10} parent=0 // pred_check
    _
  $region11: #{decoder_forward.10} parent=0 // pred_check_branch
    %13 = sbr.rel (0) target = $region13
  $region12: #{decoder_forward.10} parent=0 // pred_region
    _
  $region13: #{decoder_forward.10} parent=0 // pred_fallthru
    _
  %v14 = vld [vmem:[%s0] sm:$0xf]
  %v15 = vld [vmem:[%s0 + $0x4] sm:$0xf]
  %v16 = vld [vmem:[%s0 + $0x8] sm:$0xf]
  %v17 = vld [vmem:[%s0 + $0xc] sm:$0xf]
  %v18 = vld [vmem:[%s0 + $0x10] sm:$0xf]
  %v19 = vld [vmem:[%s0 + $0x14] sm:$0xf]
  %v20 = vld [vmem:[%s0 + $0x18] sm:$0xf]
  %v21 = vld [vmem:[%s0 + $0x1c] sm:$0xf]
  %v22 = vld [vmem:[%s0 + $0x20] sm:$0xf]
  %v23 = vld [vmem:[%s0 + $0x24] sm:$0xf]
  %v24 = vld [vmem:[%s0 + $0x28] sm:$0xf]
  %v25 = vld [vmem:[%s0 + $0x2c] sm:$0xf]
  %v26 = vld [vmem:[%s0 + $0x30] sm:$0xf]
  %v27 = vld [vmem:[%s0 + $0x34] sm:$0xf]
  %v28 = vld [vmem:[%s0 + $0x38] sm:$0xf]
  %v29 = vld [vmem:[%s0 + $0x3c] sm:$0xf]
  %v30 = vunpack.c.l.bf16 %v14
  %v31 = vunpack.c.l.bf16 %v15
  %v32 = vunpack.c.l.bf16 %v16
  %v33 = vunpack.c.l.bf16 %v17
  %v34 = vunpack.c.l.bf16 %v18
  %v35 = vunpack.c.l.bf16 %v19
  %v36 = vunpack.c.l.bf16 %v20
  %v37 = vunpack.c.l.bf16 %v21
  %v38 = vunpack.c.l.bf16 %v22
  %v39 = vunpack.c.l.bf16 %v23
  %v40 = vunpack.c.l.bf16 %v24
  %v41 = vunpack.c.l.bf16 %v25
  %v42 = vunpack.c.l.bf16 %v26
  %v43 = vunpack.c.l.bf16 %v27
  %v44 = vunpack.c.l.bf16 %v28
  %v45 = vunpack.c.l.bf16 %v29
  %v46 = vld [vmem:[%s1] sm:$0x1]
  %v48 = vlaneseq
  %v49 = vshrl.u32 %v48, 7
  %v50 = vsub.s32 0, %v49
  %v51 = vrot.slane %v46, %v50
  %v53 = vmul.f32 %v30, %v51
  %v54 = vmul.f32 %v31, %v51
  %v55 = vmul.f32 %v32, %v51
  %v56 = vmul.f32 %v33, %v51
  %v57 = vmul.f32 %v34, %v51
  %v58 = vmul.f32 %v35, %v51
  %v59 = vmul.f32 %v36, %v51
  %v60 = vmul.f32 %v37, %v51
  %v61 = vmul.f32 %v38, %v51
  %v62 = vmul.f32 %v39, %v51
  %v63 = vmul.f32 %v40, %v51
  %v64 = vmul.f32 %v41, %v51
  %v65 = vmul.f32 %v42, %v51
  %v66 = vmul.f32 %v43, %v51
  %v67 = vmul.f32 %v44, %v51
  %v68 = vmul.f32 %v45, %v51
  %v69 = vld [vmem:[%s2] sm:$0x1]
  %v71 = vlaneseq
  %v72 = vshrl.u32 %v71, 7
  %v73 = vsub.s32 0, %v72
  %v74 = vrot.slane %v69, %v73
  %v76 = vadd.f32 %v53, %v74
  %v77 = vadd.f32 %v54, %v74
  %v78 = vadd.f32 %v55, %v74
  %v79 = vadd.f32 %v56, %v74
  %v80 = vadd.f32 %v57, %v74
  %v81 = vadd.f32 %v58, %v74
  %v82 = vadd.f32 %v59, %v74
  %v83 = vadd.f32 %v60, %v74
  %v84 = vadd.f32 %v61, %v74
  %v85 = vadd.f32 %v62, %v74
  %v86 = vadd.f32 %v63, %v74
  %v87 = vadd.f32 %v64, %v74
  %v88 = vadd.f32 %v65, %v74
  %v89 = vadd.f32 %v66, %v74
  %v90 = vadd.f32 %v67, %v74
  %v91 = vadd.f32 %v68, %v74
  %v92 = vmax.f32 %v76, 0.0
  %v93 = vmax.f32 %v77, 0.0
  %v94 = vmax.f32 %v78, 0.0
  %v95 = vmax.f32 %v79, 0.0
  %v96 = vmax.f32 %v80, 0.0
  %v97 = vmax.f32 %v81, 0.0
  %v98 = vmax.f32 %v82, 0.0
  %v99 = vmax.f32 %v83, 0.0
  %v100 = vmax.f32 %v84, 0.0
  %v101 = vmax.f32 %v85, 0.0
  %v102 = vmax.f32 %v86, 0.0
  %v103 = vmax.f32 %v87, 0.0
  %v104 = vmax.f32 %v88, 0.0
  %v105 = vmax.f32 %v89, 0.0
  %v106 = vmax.f32 %v90, 0.0
  %v107 = vmax.f32 %v91, 0.0
  %v108 = vpack.c.bf16 %v93, %v92
  %v109 = vpack.c.bf16 %v95, %v94
  %v110 = vpack.c.bf16 %v97, %v96
  %v111 = vpack.c.bf16 %v99, %v98
  %v112 = vpack.c.bf16 %v101, %v100
  %v113 = vpack.c.bf16 %v103, %v102
  %v114 = vpack.c.bf16 %v105, %v104
  %v115 = vpack.c.bf16 %v107, %v106
  %v124 = vunpack.c.l.b16 %v108
  %v125 = vunpack.c.h.b16 %v108
  %v126 = vunpack.c.l.b16 %v109
  %v127 = vunpack.c.h.b16 %v109
  %v128 = vunpack.c.l.b16 %v110
  %v129 = vunpack.c.h.b16 %v110
  %v130 = vunpack.c.l.b16 %v111
  %v131 = vunpack.c.h.b16 %v111
  %v132 = vunpack.c.l.b16 %v112
  %v133 = vunpack.c.h.b16 %v112
  %v134 = vunpack.c.l.b16 %v113
  %v135 = vunpack.c.h.b16 %v113
  %v136 = vunpack.c.l.b16 %v114
  %v137 = vunpack.c.h.b16 %v114
  %v138 = vunpack.c.l.b16 %v115
  %v139 = vunpack.c.h.b16 %v115
  %v140 = vpack.c.b16 %v124, %v124
  %v141 = vpack.c.b16 %v125, %v125
  %v142 = vpack.c.b16 %v126, %v126
  %v143 = vpack.c.b16 %v127, %v127
  %v144 = vpack.c.b16 %v128, %v128
  %v145 = vpack.c.b16 %v129, %v129
  %v146 = vpack.c.b16 %v130, %v130
  %v147 = vpack.c.b16 %v131, %v131
  %v148 = vpack.c.b16 %v132, %v132
  %v149 = vpack.c.b16 %v133, %v133
  %v150 = vpack.c.b16 %v134, %v134
  %v151 = vpack.c.b16 %v135, %v135
  %v152 = vpack.c.b16 %v136, %v136
  %v153 = vpack.c.b16 %v137, %v137
  %v154 = vpack.c.b16 %v138, %v138
  %v155 = vpack.c.b16 %v139, %v139
  %vm172 = vcmask 125952
  %173 = vst.msk [vmem:[%s3] sm:$0xf] %vm172, %v140
  %174 = vst.msk [vmem:[%s3 + $0x4] sm:$0xf] %vm172, %v141
  %175 = vst.msk [vmem:[%s3 + $0x8] sm:$0xf] %vm172, %v142
  %176 = vst.msk [vmem:[%s3 + $0xc] sm:$0xf] %vm172, %v143
  %177 = vst.msk [vmem:[%s3 + $0x10] sm:$0xf] %vm172, %v144
  %178 = vst.msk [vmem:[%s3 + $0x14] sm:$0xf] %vm172, %v145
  %179 = vst.msk [vmem:[%s3 + $0x18] sm:$0xf] %vm172, %v146
  %180 = vst.msk [vmem:[%s3 + $0x1c] sm:$0xf] %vm172, %v147
  %181 = vst.msk [vmem:[%s3 + $0x20] sm:$0xf] %vm172, %v148
  %182 = vst.msk [vmem:[%s3 + $0x24] sm:$0xf] %vm172, %v149
  %183 = vst.msk [vmem:[%s3 + $0x28] sm:$0xf] %vm172, %v150
  %184 = vst.msk [vmem:[%s3 + $0x2c] sm:$0xf] %vm172, %v151
  %185 = vst.msk [vmem:[%s3 + $0x30] sm:$0xf] %vm172, %v152
  %186 = vst.msk [vmem:[%s3 + $0x34] sm:$0xf] %vm172, %v153
  %187 = vst.msk [vmem:[%s3 + $0x38] sm:$0xf] %vm172, %v154
  %188 = vst.msk [vmem:[%s3 + $0x3c] sm:$0xf] %vm172, %v155
  // Predicated region
  $region14: #{decoder_forward.10} parent=0 // pred_check
    _
  $region15: #{decoder_forward.10} parent=0 // pred_check_branch
    %190 = sbr.rel (0) target = $region17
  $region16: #{decoder_forward.10} parent=0 // pred_region
    _
  $region17: #{decoder_forward.10} parent=0 // pred_fallthru
    _
  // Predicated region
  $region18: #{decoder_forward.10} parent=0 // pred_check
    _
  $region19: #{decoder_forward.10} parent=0 // pred_check_branch
    %192 = sbr.rel (0) target = $region21
  $region20: #{decoder_forward.10} parent=0 // pred_region
    _
  $region21: #{decoder_forward.10} parent=0 // pred_fallthru
    _

// kernel: decoder_forward.11
$region0: #{decoder_forward.11}
  #allocation0 [shape = 'u32[]', space=smem, size = 0x4, offset = 0x4, fixed_abs, tag = 'smem constant byte address 0x4 - core index']
  #allocation1 [shape = 'u32[144,128]{1,0:T(1,128)}', space=vmem, size = 0x12000, scoped, tag = 'internal scratch']
  %s0 = inlined_call_operand.vmem [shape: bf16[2,256,4], index: 0, kind: input, shape index: {}]
  %s1 = inlined_call_operand.vmem [shape: bf16[8,4], index: 1, kind: input, shape index: {}]
  %s2 = inlined_call_operand.vmem [shape: f32[8,1], index: 2, kind: input, shape index: {}]
  %s3 = inlined_call_operand.vmem [shape: f32[2,8,256], index: 3, kind: output, shape index: {}]
  %s4 = sld [smem:[#allocation0]]
  $region45: #{decoder_forward.11} parent=0
    _
  %s6 = ssub.s32 1, %s4
  %s7 = scalar_select 0, %s6, %s4
  loop: start=0, step=1, limit=4
  $region2: #{decoder_forward.11} parent=0 // loop_pre_header
    _
  $region3: #{decoder_forward.11} parent=0 // loop_header
    %s9 = sphi 0, %s13
    %p10 = scmp.ge.s32.totalorder %s9, 4
    %s16 = sphi 0, %s28
    %s17 = sphi 0, %s24
    %s18 = sphi 0, %s16
    %s19 = sphi 0, %s17
    %s20 = sphi 0, %s18
    %s21 = sphi 0, %s19
    %s33 = sphi 0, %s35
    %s36 = sphi 0, %s33
    %s37 = sphi 0, %s36
    %s53 = sphi 0, %s37
    %s57 = sphi 0, %s57
    %s59 = sphi 0, %s57
    %s60 = sphi 0, %s59
    %s74 = sphi 0, %s60
    %s78 = sphi 0, %s78
    %s80 = sphi 0, %s78
    %s81 = sphi 0, %s80
    %s95 = sphi 0, %s81
    %s103 = sphi 0, %s105
    %s106 = sphi 0, %s103
    %s107 = sphi 0, %s106
    %s123 = sphi 0, %s107
  $region4: #{decoder_forward.11} parent=0 // loop_header_branch
    %12 = sbr.rel (%p10) target = $region8
  $region5: #{decoder_forward.11} parent=0 // loop_body
    %s14 = ssub.s32 %s9, 1
    %s15 = ssub.s32 %s9, 2
    %s22 = sadd.s32 1, %s17
    %p23 = scmp.ge.s32.totalorder %s22, 1
    %s24 = scalar_select %p23, 0, %s22
    %s25 = sadd.s32 1, %s16
    %s26 = scalar_select %p23, %s25, %s16
    %p27 = scmp.ge.s32.totalorder %s26, 2
    %s28 = scalar_select %p27, 0, %s26
    %s29 = ssub.s32 %s16, %s28
    %s30 = ssub.s32 %s17, %s24
    %s31 = sor.u32 %s29, %s30
    %p32 = scmp.eq.s32.totalorder %s31, 0
    %s34 = sadd.s32 %s33, 1
    %s35 = scalar_select %p32, %s33, %s34
    %p38 = pneg %p32
    %p39 = scmp.eq.s32.totalorder %s9, 1
    %p40 = por %p38, %p39
    %p41 = scmp.ne.s32.totalorder %s33, %s36
    %p42 = scmp.eq.s32.totalorder %s9, 0
    %p43 = por %p41, %p42
    %p44 = scmp.ne.s32.totalorder %s33, %s36
    %p45 = scmp.eq.s32.totalorder %s14, 1
    %p46 = por %p44, %p45
    %p47 = scmp.ne.s32.totalorder %s36, %s37
    %p48 = scmp.eq.s32.totalorder %s14, 0
    %p49 = por %p47, %p48
    %p50 = scmp.ne.s32.totalorder %s36, %s37
    %p51 = scmp.eq.s32.totalorder %s15, 1
    %p52 = por %p50, %p51
    %p54 = scmp.ne.s32.totalorder %s37, %s53
    %p55 = scmp.eq.s32.totalorder %s15, 0
    %p56 = por %p54, %p55
    %s58 = sadd.s32 %s57, 1
    %p61 = scmp.eq.s32.totalorder %s9, 1
    %p62 = scmp.ne.s32.totalorder %s57, %s59
    %p63 = scmp.eq.s32.totalorder %s9, 0
    %p64 = por %p62, %p63
    %p65 = scmp.ne.s32.totalorder %s57, %s59
    %p66 = scmp.eq.s32.totalorder %s14, 1
    %p67 = por %p65, %p66
    %p68 = scmp.ne.s32.totalorder %s59, %s60
    %p69 = scmp.eq.s32.totalorder %s14, 0
    %p70 = por %p68, %p69
    %p71 = scmp.ne.s32.totalorder %s59, %s60
    %p72 = scmp.eq.s32.totalorder %s15, 1
    %p73 = por %p71, %p72
    %p75 = scmp.ne.s32.totalorder %s60, %s74
    %p76 = scmp.eq.s32.totalorder %s15, 0
    %p77 = por %p75, %p76
    %s79 = sadd.s32 %s78, 1
    %p82 = scmp.eq.s32.totalorder %s9, 1
    %p83 = scmp.ne.s32.totalorder %s78, %s80
    %p84 = scmp.eq.s32.totalorder %s9, 0
    %p85 = por %p83, %p84
    %p86 = scmp.ne.s32.totalorder %s78, %s80
    %p87 = scmp.eq.s32.totalorder %s14, 1
    %p88 = por %p86, %p87
    %p89 = scmp.ne.s32.totalorder %s80, %s81
    %p90 = scmp.eq.s32.totalorder %s14, 0
    %p91 = por %p89, %p90
    %p92 = scmp.ne.s32.totalorder %s80, %s81
    %p93 = scmp.eq.s32.totalorder %s15, 1
    %p94 = por %p92, %p93
    %p96 = scmp.ne.s32.totalorder %s81, %s95
    %p97 = scmp.eq.s32.totalorder %s15, 0
    %p98 = por %p96, %p97
    %s99 = ssub.s32 %s16, %s28
    %s100 = ssub.s32 %s17, %s24
    %s101 = sor.u32 %s99, %s100
    %p102 = scmp.eq.s32.totalorder %s101, 0
    %s104 = sadd.s32 %s103, 1
    %s105 = scalar_select %p102, %s103, %s104
    %p108 = pneg %p102
    %p109 = scmp.eq.s32.totalorder %s9, 1
    %p110 = por %p108, %p109
    %p111 = scmp.ne.s32.totalorder %s103, %s106
    %p112 = scmp.eq.s32.totalorder %s9, 0
    %p113 = por %p111, %p112
    %p114 = scmp.ne.s32.totalorder %s103, %s106
    %p115 = scmp.eq.s32.totalorder %s14, 1
    %p116 = por %p114, %p115
    %p117 = scmp.ne.s32.totalorder %s106, %s107
    %p118 = scmp.eq.s32.totalorder %s14, 0
    %p119 = por %p117, %p118
    %p120 = scmp.ne.s32.totalorder %s106, %s107
    %p121 = scmp.eq.s32.totalorder %s15, 1
    %p122 = por %p120, %p121
    %p124 = scmp.ne.s32.totalorder %s107, %s123
    %p125 = scmp.eq.s32.totalorder %s15, 0
    %p126 = por %p124, %p125
    %p127 = scmp.le.s32.totalorder 1, %s9
    %p128 = scmp.lt.s32.totalorder %s9, 3
    %p129 = pnand %p127, %p128
    %p130 = pneg %p129
    // Predicated region
    $region9: #{decoder_forward.11} parent=5 // pred_check
      _
    $region10: #{decoder_forward.11} parent=5 // pred_check_branch
      %132 = sbr.rel (%p129) target = $region12
    $region11: #{decoder_forward.11} parent=5 // pred_region
      %s133 = ssub.s32 %s9, 1
      // Predicated region
      $region13: #{decoder_forward.11} parent=11 // pred_check
        %p134 = pneg %p70
      $region14: #{decoder_forward.11} parent=11 // pred_check_branch
        %136 = sbr.rel (%p134) target = $region16
      $region15: #{decoder_forward.11} parent=11 // pred_region
        _
      $region16: #{decoder_forward.11} parent=11 // pred_fallthru
        _
      // Predicated region
      $region17: #{decoder_forward.11} parent=11 // pred_check
        %p137 = pneg %p91
      $region18: #{decoder_forward.11} parent=11 // pred_check_branch
        %139 = sbr.rel (%p137) target = $region20
      $region19: #{decoder_forward.11} parent=11 // pred_region
        _
      $region20: #{decoder_forward.11} parent=11 // pred_fallthru
        _
    $region12: #{decoder_forward.11} parent=5 // pred_fallthru
      _
    %p140 = scmp.lt.s32.totalorder %s9, 2
    // Predicated region
    $region21: #{decoder_forward.11} parent=5 // pred_check
      %p141 = pneg %p140
    $region22: #{decoder_forward.11} parent=5 // pred_check_branch
      %143 = sbr.rel (%p141) target = $region24
    $region23: #{decoder_forward.11} parent=5 // pred_region
      // Predicated region
      $region25: #{decoder_forward.11} parent=23 // pred_check
        %p144 = pneg %p43
      $region26: #{decoder_forward.11} parent=23 // pred_check_branch
        %146 = sbr.rel (%p144) target = $region28
      $region27: #{decoder_forward.11} parent=23 // pred_region
        %s147 = smul.u32 32, %s17
        %p148 = scmp.lt.s32.totalorder %s16, 1
        %s149 = scalar_select %p148, %s16, 1
        %p150 = scmp.lt.s32.totalorder %s147, 31
        %s151 = scalar_select %p150, %s147, 31
        %s152 = smul.addr %s149, 32
        %s153 = sadd.s32 %s151, %s152
        %s154 = smul.addr %s153, 4
        %s155 = scalar_lea.vmem %s0, %s154
        %s156 = smul.u32 32, %s17
      $region28: #{decoder_forward.11} parent=23 // pred_fallthru
        _
    $region24: #{decoder_forward.11} parent=5 // pred_fallthru
      _
    %p157 = scmp.le.s32.totalorder 1, %s9
    %p158 = scmp.lt.s32.totalorder %s9, 3
    %p159 = pnand %p157, %p158
    %p160 = pneg %p159
    // Predicated region
    $region29: #{decoder_forward.11} parent=5 // pred_check
      _
    $region30: #{decoder_forward.11} parent=5 // pred_check_branch
      %162 = sbr.rel (%p159) target = $region32
    $region31: #{decoder_forward.11} parent=5 // pred_region
      %s163 = ssub.s32 %s9, 1
      %s164 = smul.u32 32, %s19
      %p165 = scmp.lt.s32.totalorder %s18, 1
      %s166 = scalar_select %p165, %s18, 1
      %p167 = scmp.lt.s32.totalorder %s164, 31
      %s168 = scalar_select %p167, %s164, 31
      %s169 = smul.addr %s166, 32
      %s170 = sadd.s32 %s168, %s169
      %s171 = smul.addr %s170, 4
      %s172 = scalar_lea.vmem %s0, %s171
      %p173 = pneg %p49
      %p174 = pneg %p46
      %p175 = pneg %p70
      %p176 = pneg %p67
      %p177 = pneg %p91
      %p178 = pneg %p88
      %p179 = pneg %p119
      %p180 = pneg %p116
      %s181 = smul.u32 2, %s19
      %p182 = scmp.lt.s32.totalorder %s18, 1
      %s183 = scalar_select %p182, %s18, 1
      %p184 = scmp.lt.s32.totalorder %s181, 1
      %s185 = scalar_select %p184, %s181, 1
      %s186 = smul.addr %s183, 2
      %s187 = sadd.s32 %s185, %s186
      %s188 = smul.addr %s187, 8
      %s189 = scalar_lea.vmem %s3, %s188
      %s190 = smul.u32 32, %s19
      %p191 = scmp.lt.s32.totalorder %s18, 1
      %s192 = scalar_select %p191, %s18, 1
      %p193 = scmp.lt.s32.totalorder %s190, 31
      %s194 = scalar_select %p193, %s190, 31
      %s195 = smul.addr %s192, 32
      %s196 = sadd.s32 %s194, %s195
      %s197 = smul.addr %s196, 4
      %s198 = scalar_lea.vmem %s0, %s197
      %s199 = smul.u32 32, %s19
      %s200 = smul.u32 2, %s19
      %p201 = scmp.lt.s32.totalorder %s18, 1
      %s202 = scalar_select %p201, %s18, 1
      %p203 = scmp.lt.s32.totalorder %s200, 1
      %s204 = scalar_select %p203, %s200, 1
      %s205 = smul.addr %s202, 2
      %s206 = sadd.s32 %s204, %s205
      %s207 = smul.addr %s206, 8
      %s208 = scalar_lea.vmem %s3, %s207
      %s209 = smul.u32 2, %s19
      %v211 = vld [vmem:[%s198] sm:$0xf]
      %v212 = vld [vmem:[%s198 + $0x4] sm:$0xf]
      %v213 = vld [vmem:[%s198 + $0x8] sm:$0xf]
      %v214 = vld [vmem:[%s198 + $0xc] sm:$0xf]
      %v215 = vld [vmem:[%s198 + $0x10] sm:$0xf]
      %v216 = vld [vmem:[%s198 + $0x14] sm:$0xf]
      %v217 = vld [vmem:[%s198 + $0x18] sm:$0xf]
      %v218 = vld [vmem:[%s198 + $0x1c] sm:$0xf]
      %v219 = vld [vmem:[%s198 + $0x20] sm:$0xf]
      %v220 = vld [vmem:[%s198 + $0x24] sm:$0xf]
      %v221 = vld [vmem:[%s198 + $0x28] sm:$0xf]
      %v222 = vld [vmem:[%s198 + $0x2c] sm:$0xf]
      %v223 = vld [vmem:[%s198 + $0x30] sm:$0xf]
      %v224 = vld [vmem:[%s198 + $0x34] sm:$0xf]
      %v225 = vld [vmem:[%s198 + $0x38] sm:$0xf]
      %v226 = vld [vmem:[%s198 + $0x3c] sm:$0xf]
      %v227 = vld [vmem:[%s198 + $0x40] sm:$0xf]
      %v228 = vld [vmem:[%s198 + $0x44] sm:$0xf]
      %v229 = vld [vmem:[%s198 + $0x48] sm:$0xf]
      %v230 = vld [vmem:[%s198 + $0x4c] sm:$0xf]
      %v231 = vld [vmem:[%s198 + $0x50] sm:$0xf]
      %v232 = vld [vmem:[%s198 + $0x54] sm:$0xf]
      %v233 = vld [vmem:[%s198 + $0x58] sm:$0xf]
      %v234 = vld [vmem:[%s198 + $0x5c] sm:$0xf]
      %v235 = vld [vmem:[%s198 + $0x60] sm:$0xf]
      %v236 = vld [vmem:[%s198 + $0x64] sm:$0xf]
      %v237 = vld [vmem:[%s198 + $0x68] sm:$0xf]
      %v238 = vld [vmem:[%s198 + $0x6c] sm:$0xf]
      %v239 = vld [vmem:[%s198 + $0x70] sm:$0xf]
      %v240 = vld [vmem:[%s198 + $0x74] sm:$0xf]
      %v241 = vld [vmem:[%s198 + $0x78] sm:$0xf]
      %v242 = vld [vmem:[%s198 + $0x7c] sm:$0xf]
      %v243 = vld [vmem:[%s1] sm:$0xf]
      %v244 = vld [vmem:[%s2] sm:$0xff]
      %246 = vset.pattern.permute.xlu0 0
      %247 = vperm.xlu0 %246, %v244
      %v248 = vpop.permute.xlu0 %247
      %v282 = vunpack.c.l.b16 %v211
      %v283 = vunpack.c.l.b16 %v212
      %v284 = vunpack.c.l.b16 %v213
      %v285 = vunpack.c.l.b16 %v214
      %v286 = vunpack.c.l.b16 %v215
      %v287 = vunpack.c.l.b16 %v216
      %v288 = vunpack.c.l.b16 %v217
      %v289 = vunpack.c.l.b16 %v218
      %v290 = vunpack.c.l.b16 %v219
      %v291 = vunpack.c.l.b16 %v220
      %v292 = vunpack.c.l.b16 %v221
      %v293 = vunpack.c.l.b16 %v222
      %v294 = vunpack.c.l.b16 %v223
      %v295 = vunpack.c.l.b16 %v224
      %v296 = vunpack.c.l.b16 %v225
      %v297 = vunpack.c.l.b16 %v226
      %v298 = vunpack.c.l.b16 %v227
      %v299 = vunpack.c.l.b16 %v228
      %v300 = vunpack.c.l.b16 %v229
      %v301 = vunpack.c.l.b16 %v230
      %v302 = vunpack.c.l.b16 %v231
      %v303 = vunpack.c.l.b16 %v232
      %v304 = vunpack.c.l.b16 %v233
      %v305 = vunpack.c.l.b16 %v234
      %v306 = vunpack.c.l.b16 %v235
      %v307 = vunpack.c.l.b16 %v236
      %v308 = vunpack.c.l.b16 %v237
      %v309 = vunpack.c.l.b16 %v238
      %v310 = vunpack.c.l.b16 %v239
      %v311 = vunpack.c.l.b16 %v240
      %v312 = vunpack.c.l.b16 %v241
      %v313 = vunpack.c.l.b16 %v242
      %v314 = vpack.c.b16 %v283, %v282
      %v315 = vpack.c.b16 %v285, %v284
      %v316 = vpack.c.b16 %v287, %v286
      %v317 = vpack.c.b16 %v289, %v288
      %v318 = vpack.c.b16 %v291, %v290
      %v319 = vpack.c.b16 %v293, %v292
      %v320 = vpack.c.b16 %v295, %v294
      %v321 = vpack.c.b16 %v297, %v296
      %v322 = vpack.c.b16 %v299, %v298
      %v323 = vpack.c.b16 %v301, %v300
      %v324 = vpack.c.b16 %v303, %v302
      %v325 = vpack.c.b16 %v305, %v304
      %v326 = vpack.c.b16 %v307, %v306
      %v327 = vpack.c.b16 %v309, %v308
      %v328 = vpack.c.b16 %v311, %v310
      %v329 = vpack.c.b16 %v313, %v312
      %vm330 = vcmask 31744
      %v332 = vsel %vm330, %v243, 0
      %v335 = vsel %vm330, %v314, 0
      %v338 = vsel %vm330, %v315, 0
      %v341 = vsel %vm330, %v316, 0
      %v344 = vsel %vm330, %v317, 0
      %v347 = vsel %vm330, %v318, 0
      %v350 = vsel %vm330, %v319, 0
      %v353 = vsel %vm330, %v320, 0
      %v356 = vsel %vm330, %v321, 0
      %v359 = vsel %vm330, %v322, 0
      %v362 = vsel %vm330, %v323, 0
      %v365 = vsel %vm330, %v324, 0
      %v368 = vsel %vm330, %v325, 0
      %v371 = vsel %vm330, %v326, 0
      %v374 = vsel %vm330, %v327, 0
      %v377 = vsel %vm330, %v328, 0
      %v380 = vsel %vm330, %v329, 0
      %382 = vmatprep.subr.bf16.mxu0 0
      %383 = vmatpush1.bf16.xpose.msra.mxu0 %v335
      %384 = vmatprep.subr.bf16.mxu0 0
      %385 = vmatpush1.bf16.xpose.msra.mxu0 %v338
      %386 = vmatprep.subr.bf16.mxu0 0
      %387 = vmatpush1.bf16.xpose.msra.mxu0 %v341
      %388 = vmatprep.subr.bf16.mxu0 0
      %389 = vmatpush1.bf16.xpose.msra.mxu0 %v344
      %390 = vmatprep.subr.bf16.mxu0 0
      %391 = vmatpush1.bf16.xpose.msra.mxu0 %v347
      %392 = vmatprep.subr.bf16.mxu0 0
      %393 = vmatpush1.bf16.xpose.msra.mxu0 %v350
      %394 = vmatprep.subr.bf16.mxu0 0
      %395 = vmatpush1.bf16.xpose.msra.mxu0 %v353
      %396 = vmatprep.subr.bf16.mxu0 0
      %397 = vmatpush1.bf16.xpose.msra.mxu0 %v356
      %398 = vmatprep.subr.bf16.mxu0 0
      %399 = vmatpush1.bf16.xpose.msra.mxu0 %v359
      %400 = vmatprep.subr.bf16.mxu0 0
      %401 = vmatpush1.bf16.xpose.msra.mxu0 %v362
      %402 = vmatprep.subr.bf16.mxu0 0
      %403 = vmatpush1.bf16.xpose.msra.mxu0 %v365
      %404 = vmatprep.subr.bf16.mxu0 0
      %405 = vmatpush1.bf16.xpose.msra.mxu0 %v368
      %406 = vmatprep.subr.bf16.mxu0 0
      %407 = vmatpush1.bf16.xpose.msra.mxu0 %v371
      %408 = vmatprep.subr.bf16.mxu0 0
      %409 = vmatpush1.bf16.xpose.msra.mxu0 %v374
      %410 = vmatprep.subr.bf16.mxu0 0
      %411 = vmatpush1.bf16.xpose.msra.mxu0 %v377
      %412 = vmatprep.subr.bf16.mxu0 0
      %413 = vmatpush1.bf16.xpose.msra.mxu0 %v380
      %414 = vmatprep.mubr.bf16.mxu0 0
      %415 = vmatmul.mubr.bf16.gmra.mrb[0].mxu0 %v332
      %v416 = vpop.f32.mrb[0].mxu0
      %v417 = vadd.f32 %v248, %v416
      %v418 = vpop.f32.mrb[0].mxu0
      %v419 = vadd.f32 %v248, %v418
      %v420 = vpop.f32.mrb[0].mxu0
      %v421 = vpop.f32.mrb[0].mxu0
      %422 = vdwg.mxu0
      %v423 = vtanh.pop %v417
      %v424 = vtanh.pop %v419
      %425 = vst [vmem:[%s208] sm:$0xff] %v423
      %426 = vst [vmem:[%s208 + $0x8] sm:$0xff] %v424
      %s427 = smul.u32 2, %s19
      %p428 = scmp.lt.s32.totalorder %s18, 1
      %s429 = scalar_select %p428, %s18, 1
      %p430 = scmp.lt.s32.totalorder %s427, 1
      %s431 = scalar_select %p430, %s427, 1
      %s432 = smul.addr %s429, 2
      %s433 = sadd.s32 %s431, %s432
      %s434 = smul.addr %s433, 8
      %s435 = scalar_lea.vmem %s3, %s434
      // Predicated region
      $region33: #{decoder_forward.11} parent=31 // pred_check
        %p436 = pneg %p116
      $region34: #{decoder_forward.11} parent=31 // pred_check_branch
        %438 = sbr.rel (%p436) target = $region36
      $region35: #{decoder_forward.11} parent=31 // pred_region
        %s439 = smul.u32 2, %s19
      $region36: #{decoder_forward.11} parent=31 // pred_fallthru
        _
    $region32: #{decoder_forward.11} parent=5 // pred_fallthru
      _
    %p440 = scmp.le.s32.totalorder 2, %s9
    // Predicated region
    $region37: #{decoder_forward.11} parent=5 // pred_check
      %p441 = pneg %p440
    $region38: #{decoder_forward.11} parent=5 // pred_check_branch
      %443 = sbr.rel (%p441) target = $region40
    $region39: #{decoder_forward.11} parent=5 // pred_region
      %s444 = ssub.s32 %s9, 2
      // Predicated region
      $region41: #{decoder_forward.11} parent=39 // pred_check
        %p445 = pneg %p122
      $region42: #{decoder_forward.11} parent=39 // pred_check_branch
        %447 = sbr.rel (%p445) target = $region44
      $region43: #{decoder_forward.11} parent=39 // pred_region
        %s448 = smul.u32 2, %s21
        %p449 = scmp.lt.s32.totalorder %s20, 1
        %s450 = scalar_select %p449, %s20, 1
        %p451 = scmp.lt.s32.totalorder %s448, 1
        %s452 = scalar_select %p451, %s448, 1
        %s453 = smul.addr %s450, 2
        %s454 = sadd.s32 %s452, %s453
        %s455 = smul.addr %s454, 8
        %s456 = scalar_lea.vmem %s3, %s455
      $region44: #{decoder_forward.11} parent=39 // pred_fallthru
        _
    $region40: #{decoder_forward.11} parent=5 // pred_fallthru
      _
  $region6: #{decoder_forward.11} parent=0 // loop_footer
    %s13 = sadd.s32 1, %s9
  $region7: #{decoder_forward.11} parent=0 // loop_footer_branch
    %8 = sbr.rel target = $region3
  $region8: #{decoder_forward.11} parent=0 // loop_exit
    _

</llo_original>
